<compile_context>
chip_gen: v7x
topology: tpu7x:2x2x1
jax: 0.10.0
libtpu: 0.0.40
codegen_flags: <defaults>
</compile_context>

<pallas_src>
import jax
import jax.numpy as jnp
from jax import lax
from jax.experimental import pallas as pl
from jax.experimental.pallas import tpu as pltpu

EMBED_SIZE = 256   # C (must match the nn.Linear in_features)
BLOCK_SIZE = 64    # max sequence length for the tril mask


def head_kernel(x_ref, w_ref, o_ref):
    # x_ref: (Bb, T, C)   w_ref: (C, 3H)  [Wq columns pre-scaled by C**-0.5]
    # o_ref: (Bb, T, H)
    Bb, T, C = x_ref.shape
    H = o_ref.shape[-1]

    # Fused projection: one big matmul over the whole batch block.
    x2d = x_ref[...].reshape(Bb * T, C)                                   # (Bb*T, C)
    kqv = jnp.dot(x2d, w_ref[...], preferred_element_type=jnp.float32)    # (Bb*T, 3H)
    kqv = kqv.reshape(Bb, T, 3 * H)
    k = kqv[:, :, 0 * H:1 * H]          # (Bb, T, H)
    q = kqv[:, :, 1 * H:2 * H]          # (Bb, T, H), already scaled by C**-0.5
    v = kqv[:, :, 2 * H:3 * H]          # (Bb, T, H)

    # scale = k @ q^T  (batched contraction over H, no explicit transpose)
    s = lax.dot_general(
        k, q,
        dimension_numbers=(((2,), (2,)), ((0,), (0,))),
        preferred_element_type=jnp.float32)                               # (Bb, T, T)

    # causal mask: tril[:T,:T] == 0  ->  -inf  (keep where row >= col)
    row = lax.broadcasted_iota(jnp.int32, (T, T), 0)
    col = lax.broadcasted_iota(jnp.int32, (T, T), 1)
    s = jnp.where((row >= col)[None, :, :], s, -jnp.inf)

    # numerically stable softmax; divide via approximate reciprocal on the EUP
    s = s - jnp.max(s, axis=-1, keepdims=True)
    p = jnp.exp(s)
    p = p * pl.reciprocal(jnp.sum(p, axis=-1, keepdims=True), approx=True)

    # out = p @ v  (batched)
    out = lax.dot_general(
        p, v,
        dimension_numbers=(((2,), (1,)), ((0,), (0,))),
        preferred_element_type=jnp.float32)                               # (Bb, T, H)
    o_ref[...] = out.astype(o_ref.dtype)


def _pick_batch_block(B, max_bb=32):
    """Largest divisor of B that is <= max_bb; prefer >= 2 grid steps (v7x megacore)."""
    bb = min(B, max_bb)
    while B % bb:
        bb -= 1
    if bb == B and B > 1:
        for cand in range(bb // 2, 0, -1):
            if B % cand == 0:
                return cand
    return bb


def head_forward(x, wk_t, wq_t, wv_t):
    """x: (B, T, C) f32; wk_t/wq_t/wv_t: (C, H) f32 (already transposed Linear weights)."""
    B, T, C = x.shape
    H = wk_t.shape[1]
    assert C == EMBED_SIZE and T <= BLOCK_SIZE

    # Fold the attention scale into the query projection (trace-time, free) and
    # fuse the three projection weights into a single (C, 3H) matrix.
    w_kqv = jnp.concatenate([wk_t, wq_t * (C ** -0.5), wv_t], axis=1)     # (C, 3H)

    bb = _pick_batch_block(B)
    grid = (B // bb,)

    return pl.pallas_call(
        head_kernel,
        out_shape=jax.ShapeDtypeStruct((B, T, H), x.dtype),
        grid_spec=pltpu.PrefetchScalarGridSpec(
            num_scalar_prefetch=0,
            grid=grid,
            in_specs=[
                pl.BlockSpec((bb, T, C), lambda b: (b, 0, 0)),
                pl.BlockSpec((C, 3 * H), lambda b: (0, 0)),
            ],
            out_specs=pl.BlockSpec((bb, T, H), lambda b: (b, 0, 0)),
        ),
        compiler_params=pltpu.CompilerParams(
            dimension_semantics=("parallel",),
            vmem_limit_bytes=32 * 1024 * 1024,   # safe on v5e/v6e/v7x
        ),
    )(x, w_kqv)


def head_reference(x, wk_t, wq_t, wv_t):
    """Pure-JAX reference mirroring the PyTorch forward (including k @ q^T)."""
    B, T, C = x.shape
    k = x @ wk_t
    q = x @ wq_t
    v = x @ wv_t
    s = jnp.einsum("btd,bsd->bts", k, q) * (C ** -0.5)
    mask = jnp.tril(jnp.ones((T, T), dtype=bool))
    s = jnp.where(mask, s, -jnp.inf)
    s = jax.nn.softmax(s, axis=-1)
    return s @ v


if __name__ == "__main__":
    B, T, C = 8, 64, EMBED_SIZE
    HEAD_SIZE = 32

    key = jax.random.PRNGKey(0)
    kx, kk, kq, kv = jax.random.split(key, 4)

    x = jax.random.normal(kx, (B, T, C), dtype=jnp.float32)
    # nn.Linear(embed_size, head_size, bias=False) weight has shape (H, C); y = x @ W^T.
    # Store the transposed weights (C, H) so the kernel does a plain matmul.
    wk_t = (jax.random.normal(kk, (HEAD_SIZE, C), dtype=jnp.float32) * (C ** -0.5)).T
    wq_t = (jax.random.normal(kq, (HEAD_SIZE, C), dtype=jnp.float32) * (C ** -0.5)).T
    wv_t = (jax.random.normal(kv, (HEAD_SIZE, C), dtype=jnp.float32) * (C ** -0.5)).T

    out = head_forward(x, wk_t, wq_t, wv_t)
    out = jax.block_until_ready(out)

    ref = head_reference(x, wk_t, wq_t, wv_t)
    assert out.shape == (B, T, HEAD_SIZE)
    assert jnp.allclose(out, ref, atol=2e-3, rtol=2e-3), "mismatch vs reference"

    print("KERNEL_OK")
</pallas_src>

<mosaic_0001>
module attributes {stable_mosaic.version = 11 : i64} {
  func.func @head_kernel(%arg0: i32, %arg1: memref<4x64x256xf32, #tpu.memory_space<vmem>>, %arg2: memref<256x96xf32, #tpu.memory_space<vmem>>, %arg3: memref<4x64x32xf32, #tpu.memory_space<vmem>>) attributes {dimension_semantics = [#tpu.dimension_semantics<parallel>], iteration_bounds = array<i64: 2>, scalar_prefetch = 0 : i64, scratch_operands = 0 : i64, tpu.core_type = #tpu.core_type<tc>, window_params = [{transform_indices = @transform_0, window_bounds = array<i64: 4, 64, 256>}, {pipeline_mode = #tpu.pipeline_mode<synchronous>, transform_indices = @transform_1, window_bounds = array<i64: 256, 96>}, {transform_indices = @transform_2, window_bounds = array<i64: 4, 64, 32>}]} {
    %c0 = arith.constant 0 : index
    %c0_0 = arith.constant 0 : index
    %c0_1 = arith.constant 0 : index
    %0 = vector.load %arg1[%c0, %c0_0, %c0_1] : memref<4x64x256xf32, #tpu.memory_space<vmem>>, vector<4x64x256xf32>
    %1 = vector.shape_cast %0 : vector<4x64x256xf32> to vector<256x256xf32>
    %c0_2 = arith.constant 0 : index
    %c0_3 = arith.constant 0 : index
    %2 = vector.load %arg2[%c0_2, %c0_3] : memref<256x96xf32, #tpu.memory_space<vmem>>, vector<256x96xf32>
    %cst = arith.constant dense<0.000000e+00> : vector<256x96xf32>
    %3 = tpu.matmul %1, %2, %cst {dimension_numbers = #tpu.dot_dimension_numbers<[1], [0], [0], [1], [0, 0, 1, 1], [], []>} : vector<256x256xf32>, vector<256x96xf32>, vector<256x96xf32> -> vector<256x96xf32>
    %4 = vector.shape_cast %3 : vector<256x96xf32> to vector<4x64x96xf32>
    %5 = vector.extract_strided_slice %4 {offsets = [0, 0, 0], sizes = [4, 64, 32], strides = [1, 1, 1]} : vector<4x64x96xf32> to vector<4x64x32xf32>
    %6 = vector.extract_strided_slice %4 {offsets = [0, 0, 32], sizes = [4, 64, 32], strides = [1, 1, 1]} : vector<4x64x96xf32> to vector<4x64x32xf32>
    %7 = vector.extract_strided_slice %4 {offsets = [0, 0, 64], sizes = [4, 64, 32], strides = [1, 1, 1]} : vector<4x64x96xf32> to vector<4x64x32xf32>
    %cst_4 = arith.constant dense<0.000000e+00> : vector<4x64x64xf32>
    %8 = tpu.matmul %5, %6, %cst_4 {dimension_numbers = #tpu.dot_dimension_numbers<[2], [2], [1], [1], [0, 0, 0, 1, 1, 1], [0], [0]>} : vector<4x64x32xf32>, vector<4x64x32xf32>, vector<4x64x64xf32> -> vector<4x64x64xf32>
    %9 = tpu.iota {dimensions = array<i32: 0>} : vector<64x64xi32>
    %10 = tpu.iota {dimensions = array<i32: 1>} : vector<64x64xi32>
    %11 = arith.cmpi sge, %9, %10 : vector<64x64xi32>
    %12 = vector.shape_cast %11 : vector<64x64xi1> to vector<1x64x64xi1>
    %cst_5 = arith.constant 0xFF800000 : f32
    %13 = vector.shape_cast %12 : vector<1x64x64xi1> to vector<1x64x64xi1>
    %14 = vector.broadcast %13 : vector<1x64x64xi1> to vector<4x64x64xi1>
    %15 = vector.broadcast %cst_5 : f32 to vector<4x64x64xf32>
    %16 = arith.select %14, %8, %15 : vector<4x64x64xi1>, vector<4x64x64xf32>
    %cst_6 = arith.constant dense<0xFF800000> : vector<4x64xf32>
    %17 = vector.multi_reduction <maximumf>, %16, %cst_6 [2] : vector<4x64x64xf32> to vector<4x64xf32>
    %18 = vector.shape_cast %17 : vector<4x64xf32> to vector<4x64x1xf32>
    %19 = vector.broadcast %18 : vector<4x64x1xf32> to vector<4x64x64xf32>
    %20 = arith.subf %16, %19 : vector<4x64x64xf32>
    %21 = math.exp %20 : vector<4x64x64xf32>
    %cst_7 = arith.constant dense<0.000000e+00> : vector<4x64xf32>
    %22 = vector.multi_reduction <add>, %21, %cst_7 [2] : vector<4x64x64xf32> to vector<4x64xf32>
    %23 = vector.shape_cast %22 : vector<4x64xf32> to vector<4x64x1xf32>
    %24 = tpu.reciprocal %23 {approx = true} : vector<4x64x1xf32> -> vector<4x64x1xf32>
    %25 = vector.broadcast %24 : vector<4x64x1xf32> to vector<4x64x64xf32>
    %26 = arith.mulf %21, %25 : vector<4x64x64xf32>
    %cst_8 = arith.constant dense<0.000000e+00> : vector<4x64x32xf32>
    %27 = tpu.matmul %26, %7, %cst_8 {dimension_numbers = #tpu.dot_dimension_numbers<[2], [1], [1], [2], [0, 0, 0, 1, 1, 2], [0], [0]>} : vector<4x64x64xf32>, vector<4x64x32xf32>, vector<4x64x32xf32> -> vector<4x64x32xf32>
    %c0_9 = arith.constant 0 : index
    %c0_10 = arith.constant 0 : index
    %c0_11 = arith.constant 0 : index
    %28 = vector.load %arg3[%c0_9, %c0_10, %c0_11] : memref<4x64x32xf32, #tpu.memory_space<vmem>>, vector<4x64x32xf32>
    tpu.vector_store %arg3[%c0_9, %c0_10, %c0_11], %27 {strides = array<i32>} : memref<4x64x32xf32, #tpu.memory_space<vmem>>, vector<4x64x32xf32>,
    return
  }
  func.func @transform_0(%arg0: i32) -> (i32, i32, i32) {
    %c0_i32 = arith.constant 0 : i32
    %c0_i32_0 = arith.constant 0 : i32
    %c0_i32_1 = arith.constant 0 : i32
    return %arg0, %c0_i32, %c0_i32_0 : i32, i32, i32
  }
  func.func @transform_1(%arg0: i32) -> (i32, i32) {
    %c0_i32 = arith.constant 0 : i32
    %c0_i32_0 = arith.constant 0 : i32
    %c0_i32_1 = arith.constant 0 : i32
    return %c0_i32, %c0_i32_0 : i32, i32
  }
  func.func @transform_2(%arg0: i32) -> (i32, i32, i32) {
    %c0_i32 = arith.constant 0 : i32
    %c0_i32_0 = arith.constant 0 : i32
    %c0_i32_1 = arith.constant 0 : i32
    return %arg0, %c0_i32, %c0_i32_0 : i32, i32, i32
  }
}

</mosaic_0001>

<llo_original>
// kernel: tpu_custom_call.1
$region0: #{tpu_custom_call.1}
  #allocation0 [shape = 'u32[]', space=smem, size = 0x4, offset = 0x4, fixed_abs, tag = 'smem constant byte address 0x4 - core index']
  #allocation1 [shape = 'u32[144,128]{1,0:T(1,128)}', space=vmem, size = 0x12000, scoped, tag = 'internal scratch']
  %s0 = inlined_call_operand.hbm [shape: f32[8,64,256], index: 0, kind: input, shape index: {}]
  %s1 = inlined_call_operand.vmem [shape: f32[256,96], index: 1, kind: input, shape index: {}]
  %s2 = inlined_call_operand.vmem [shape: f32[8,64,32], index: 2, kind: output, shape index: {}]
  %s3 = sld [smem:[#allocation0]]
  $region45: #{tpu_custom_call.1} parent=0
    _
  %s5 = ssub.s32 1, %s3
  %s6 = scalar_select 0, %s5, %s3
  $region1: #{tpu_custom_call.1} parent=0
    #allocation2 [shape = 'u8[524288]{0}', space=vmem, size = 0x80000, scoped, tag = 'input window, operand 0']
    #allocation3 [shape = 's32[2]{0}', space=sflag, size = 0x8, scoped, tag = 'scoped memory for tpu_custom_call.1']
    %7 = vsyncpa [#allocation3], 0
    %s8 = scalar_lea.sflag [#allocation3], 1
    %9 = vsyncpa %s8, 0
    loop: start=0, step=1, limit=4
    $region2: #{tpu_custom_call.1} parent=1 // loop_pre_header
      _
    $region3: #{tpu_custom_call.1} parent=1 // loop_header
      %s11 = sphi 0, %s15
      %p12 = scmp.ge.s32.totalorder %s11, 4
      %s21 = sphi 0, %s23
      %s24 = sphi 0, %s21
      %s25 = sphi 0, %s24
      %s41 = sphi 0, %s25
      %s45 = sphi 0, %s45
      %s47 = sphi 0, %s45
      %s48 = sphi 0, %s47
      %s62 = sphi 0, %s48
      %s68 = sphi 0, %s70
      %s71 = sphi 0, %s68
      %s72 = sphi 0, %s71
      %s88 = sphi 0, %s72
    $region4: #{tpu_custom_call.1} parent=1 // loop_header_branch
      %14 = sbr.rel (%p12) target = $region8
    $region5: #{tpu_custom_call.1} parent=1 // loop_body
      %s16 = ssub.s32 %s11, 1
      %s17 = ssub.s32 %s11, 2
      %s18 = sadd.s32 %s11, 1
      %s19 = ssub.s32 %s11, %s18
      %p20 = scmp.eq.s32.totalorder %s19, 0
      %s22 = sadd.s32 %s21, 1
      %s23 = scalar_select %p20, %s21, %s22
      %p26 = pneg %p20
      %p27 = scmp.eq.s32.totalorder %s11, 1
      %p28 = por %p26, %p27
      %p29 = scmp.ne.s32.totalorder %s21, %s24
      %p30 = scmp.eq.s32.totalorder %s11, 0
      %p31 = por %p29, %p30
      %p32 = scmp.ne.s32.totalorder %s21, %s24
      %p33 = scmp.eq.s32.totalorder %s16, 1
      %p34 = por %p32, %p33
      %p35 = scmp.ne.s32.totalorder %s24, %s25
      %p36 = scmp.eq.s32.totalorder %s16, 0
      %p37 = por %p35, %p36
      %p38 = scmp.ne.s32.totalorder %s24, %s25
      %p39 = scmp.eq.s32.totalorder %s17, 1
      %p40 = por %p38, %p39
      %p42 = scmp.ne.s32.totalorder %s25, %s41
      %p43 = scmp.eq.s32.totalorder %s17, 0
      %p44 = por %p42, %p43
      %s46 = sadd.s32 %s45, 1
      %p49 = scmp.eq.s32.totalorder %s11, 1
      %p50 = scmp.ne.s32.totalorder %s45, %s47
      %p51 = scmp.eq.s32.totalorder %s11, 0
      %p52 = por %p50, %p51
      %p53 = scmp.ne.s32.totalorder %s45, %s47
      %p54 = scmp.eq.s32.totalorder %s16, 1
      %p55 = por %p53, %p54
      %p56 = scmp.ne.s32.totalorder %s47, %s48
      %p57 = scmp.eq.s32.totalorder %s16, 0
      %p58 = por %p56, %p57
      %p59 = scmp.ne.s32.totalorder %s47, %s48
      %p60 = scmp.eq.s32.totalorder %s17, 1
      %p61 = por %p59, %p60
      %p63 = scmp.ne.s32.totalorder %s48, %s62
      %p64 = scmp.eq.s32.totalorder %s17, 0
      %p65 = por %p63, %p64
      %s66 = ssub.s32 %s11, %s18
      %p67 = scmp.eq.s32.totalorder %s66, 0
      %s69 = sadd.s32 %s68, 1
      %s70 = scalar_select %p67, %s68, %s69
      %p73 = pneg %p67
      %p74 = scmp.eq.s32.totalorder %s11, 1
      %p75 = por %p73, %p74
      %p76 = scmp.ne.s32.totalorder %s68, %s71
      %p77 = scmp.eq.s32.totalorder %s11, 0
      %p78 = por %p76, %p77
      %p79 = scmp.ne.s32.totalorder %s68, %s71
      %p80 = scmp.eq.s32.totalorder %s16, 1
      %p81 = por %p79, %p80
      %p82 = scmp.ne.s32.totalorder %s71, %s72
      %p83 = scmp.eq.s32.totalorder %s16, 0
      %p84 = por %p82, %p83
      %p85 = scmp.ne.s32.totalorder %s71, %s72
      %p86 = scmp.eq.s32.totalorder %s17, 1
      %p87 = por %p85, %p86
      %p89 = scmp.ne.s32.totalorder %s72, %s88
      %p90 = scmp.eq.s32.totalorder %s17, 0
      %p91 = por %p89, %p90
      %p92 = scmp.le.s32.totalorder 1, %s11
      %p93 = scmp.lt.s32.totalorder %s11, 3
      %p94 = pnand %p92, %p93
      %p95 = pneg %p94
      // Predicated region
      $region9: #{tpu_custom_call.1} parent=5 // pred_check
        _
      $region10: #{tpu_custom_call.1} parent=5 // pred_check_branch
        %97 = sbr.rel (%p94) target = $region12
      $region11: #{tpu_custom_call.1} parent=5 // pred_region
        %s98 = ssub.s32 %s11, 1
        // Predicated region
        $region13: #{tpu_custom_call.1} parent=11 // pred_check
          %p99 = pneg %p58
        $region14: #{tpu_custom_call.1} parent=11 // pred_check_branch
          %101 = sbr.rel (%p99) target = $region16
        $region15: #{tpu_custom_call.1} parent=11 // pred_region
          _
        $region16: #{tpu_custom_call.1} parent=11 // pred_fallthru
          _
      $region12: #{tpu_custom_call.1} parent=5 // pred_fallthru
        _
      %p102 = scmp.lt.s32.totalorder %s11, 2
      // Predicated region
      $region17: #{tpu_custom_call.1} parent=5 // pred_check
        %p103 = pneg %p102
      $region18: #{tpu_custom_call.1} parent=5 // pred_check_branch
        %105 = sbr.rel (%p103) target = $region20
      $region19: #{tpu_custom_call.1} parent=5 // pred_region
        // Predicated region
        $region21: #{tpu_custom_call.1} parent=19 // pred_check
          %p106 = pneg %p31
        $region22: #{tpu_custom_call.1} parent=19 // pred_check_branch
          %108 = sbr.rel (%p106) target = $region24
        $region23: #{tpu_custom_call.1} parent=19 // pred_region
          %s109 = sand.u32 %s21, 1
          %s110 = scalar_lea.sflag [#allocation3], %s109
          %s111 = sand.u32 %s21, 1
          %s112 = smul.addr %s111, 512
          %s113 = scalar_lea.vmem [#allocation2], %s112
          %s114 = smul.u32 4, %s11
          %s116 = ssub.s32 8192, 8192
          %117 = vsyncadd %s110, %s116
          %s118 = smul.addr %s114, 16
          %s119 = smul.addr %s118, 128
          %s120 = scalar_lea.hbm %s0, %s119
          %s121 = sshll.u32 %s113, 4
          %s122 = int_to_ptr.vmem [resolvable:$true] %s121
          %127 = dma.hbm_to_vmem [thread:$0]  %s120, 8192, %s122, %s110, 256, 256, 16
        $region24: #{tpu_custom_call.1} parent=19 // pred_fallthru
          _
      $region20: #{tpu_custom_call.1} parent=5 // pred_fallthru
        _
      %p128 = scmp.le.s32.totalorder 1, %s11
      %p129 = scmp.lt.s32.totalorder %s11, 3
      %p130 = pnand %p128, %p129
      %p131 = pneg %p130
      // Predicated region
      $region25: #{tpu_custom_call.1} parent=5 // pred_check
        _
      $region26: #{tpu_custom_call.1} parent=5 // pred_check_branch
        %133 = sbr.rel (%p130) target = $region28
      $region27: #{tpu_custom_call.1} parent=5 // pred_region
        %s134 = ssub.s32 %s11, 1
        %s135 = sand.u32 %s24, 1
        %s136 = scalar_lea.sflag [#allocation3], %s135
        %s137 = sand.u32 %s24, 1
        %s138 = smul.addr %s137, 512
        %s139 = scalar_lea.vmem [#allocation2], %s138
        // Predicated region
        $region29: #{tpu_custom_call.1} parent=27 // pred_check
          %p140 = pneg %p37
        $region30: #{tpu_custom_call.1} parent=27 // pred_check_branch
          %142 = sbr.rel (%p140) target = $region32
        $region31: #{tpu_custom_call.1} parent=27 // pred_region
          %143 = dma.done %s136, 8192
        $region32: #{tpu_custom_call.1} parent=27 // pred_fallthru
          _
        %s144 = sand.u32 %s24, 1
        %s145 = scalar_lea.sflag [#allocation3], %s144
        %s146 = sand.u32 %s24, 1
        %s147 = smul.addr %s146, 512
        %s148 = scalar_lea.vmem [#allocation2], %s147
        %p149 = pneg %p37
        %p150 = pneg %p34
        %p151 = pneg %p58
        %p152 = pneg %p55
        %p153 = pneg %p84
        %p154 = pneg %p81
        %s155 = smul.u32 4, %s16
        %p156 = scmp.lt.s32.totalorder %s155, 7
        %s157 = scalar_select %p156, %s155, 7
        %s158 = smul.addr %s157, 8
        %s159 = smul.addr %s158, 8
        %s160 = scalar_lea.vmem %s2, %s159
        %s161 = smul.u32 4, %s16
        %s162 = smul.u32 4, %s16
        %p163 = scmp.lt.s32.totalorder %s162, 7
        %s164 = scalar_select %p163, %s162, 7
        %s165 = smul.addr %s164, 8
        %s166 = smul.addr %s165, 8
        %s167 = scalar_lea.vmem %s2, %s166
        %s168 = smul.u32 4, %s16
        %v169 = vld [vmem:[%s139] sm:$0xff]
        %v170 = vld [vmem:[%s139 + $0x8] sm:$0xff]
        %v171 = vld [vmem:[%s139 + $0x10] sm:$0xff]
        %v172 = vld [vmem:[%s139 + $0x18] sm:$0xff]
        %v173 = vld [vmem:[%s139 + $0x20] sm:$0xff]
        %v174 = vld [vmem:[%s139 + $0x28] sm:$0xff]
        %v175 = vld [vmem:[%s139 + $0x30] sm:$0xff]
        %v176 = vld [vmem:[%s139 + $0x38] sm:$0xff]
        %v177 = vld [vmem:[%s139 + $0x40] sm:$0xff]
        %v178 = vld [vmem:[%s139 + $0x48] sm:$0xff]
        %v179 = vld [vmem:[%s139 + $0x50] sm:$0xff]
        %v180 = vld [vmem:[%s139 + $0x58] sm:$0xff]
        %v181 = vld [vmem:[%s139 + $0x60] sm:$0xff]
        %v182 = vld [vmem:[%s139 + $0x68] sm:$0xff]
        %v183 = vld [vmem:[%s139 + $0x70] sm:$0xff]
        %v184 = vld [vmem:[%s139 + $0x78] sm:$0xff]
        %v185 = vld [vmem:[%s139 + $0x80] sm:$0xff]
        %v186 = vld [vmem:[%s139 + $0x88] sm:$0xff]
        %v187 = vld [vmem:[%s139 + $0x90] sm:$0xff]
        %v188 = vld [vmem:[%s139 + $0x98] sm:$0xff]
        %v189 = vld [vmem:[%s139 + $0xa0] sm:$0xff]
        %v190 = vld [vmem:[%s139 + $0xa8] sm:$0xff]
        %v191 = vld [vmem:[%s139 + $0xb0] sm:$0xff]
        %v192 = vld [vmem:[%s139 + $0xb8] sm:$0xff]
        %v193 = vld [vmem:[%s139 + $0xc0] sm:$0xff]
        %v194 = vld [vmem:[%s139 + $0xc8] sm:$0xff]
        %v195 = vld [vmem:[%s139 + $0xd0] sm:$0xff]
        %v196 = vld [vmem:[%s139 + $0xd8] sm:$0xff]
        %v197 = vld [vmem:[%s139 + $0xe0] sm:$0xff]
        %v198 = vld [vmem:[%s139 + $0xe8] sm:$0xff]
        %v199 = vld [vmem:[%s139 + $0xf0] sm:$0xff]
        %v200 = vld [vmem:[%s139 + $0xf8] sm:$0xff]
        %v201 = vld [vmem:[%s139 + $0x100] sm:$0xff]
        %v202 = vld [vmem:[%s139 + $0x108] sm:$0xff]
        %v203 = vld [vmem:[%s139 + $0x110] sm:$0xff]
        %v204 = vld [vmem:[%s139 + $0x118] sm:$0xff]
        %v205 = vld [vmem:[%s139 + $0x120] sm:$0xff]
        %v206 = vld [vmem:[%s139 + $0x128] sm:$0xff]
        %v207 = vld [vmem:[%s139 + $0x130] sm:$0xff]
        %v208 = vld [vmem:[%s139 + $0x138] sm:$0xff]
        %v209 = vld [vmem:[%s139 + $0x140] sm:$0xff]
        %v210 = vld [vmem:[%s139 + $0x148] sm:$0xff]
        %v211 = vld [vmem:[%s139 + $0x150] sm:$0xff]
        %v212 = vld [vmem:[%s139 + $0x158] sm:$0xff]
        %v213 = vld [vmem:[%s139 + $0x160] sm:$0xff]
        %v214 = vld [vmem:[%s139 + $0x168] sm:$0xff]
        %v215 = vld [vmem:[%s139 + $0x170] sm:$0xff]
        %v216 = vld [vmem:[%s139 + $0x178] sm:$0xff]
        %v217 = vld [vmem:[%s139 + $0x180] sm:$0xff]
        %v218 = vld [vmem:[%s139 + $0x188] sm:$0xff]
        %v219 = vld [vmem:[%s139 + $0x190] sm:$0xff]
        %v220 = vld [vmem:[%s139 + $0x198] sm:$0xff]
        %v221 = vld [vmem:[%s139 + $0x1a0] sm:$0xff]
        %v222 = vld [vmem:[%s139 + $0x1a8] sm:$0xff]
        %v223 = vld [vmem:[%s139 + $0x1b0] sm:$0xff]
        %v224 = vld [vmem:[%s139 + $0x1b8] sm:$0xff]
        %v225 = vld [vmem:[%s139 + $0x1c0] sm:$0xff]
        %v226 = vld [vmem:[%s139 + $0x1c8] sm:$0xff]
        %v227 = vld [vmem:[%s139 + $0x1d0] sm:$0xff]
        %v228 = vld [vmem:[%s139 + $0x1d8] sm:$0xff]
        %v229 = vld [vmem:[%s139 + $0x1e0] sm:$0xff]
        %v230 = vld [vmem:[%s139 + $0x1e8] sm:$0xff]
        %v231 = vld [vmem:[%s139 + $0x1f0] sm:$0xff]
        %v232 = vld [vmem:[%s139 + $0x1f8] sm:$0xff]
        %v233 = vld [vmem:[%s1] sm:$0xff]
        %v234 = vld [vmem:[%s1 + $0x8] sm:$0xff]
        %v235 = vld [vmem:[%s1 + $0x10] sm:$0xff]
        %v236 = vld [vmem:[%s1 + $0x18] sm:$0xff]
        %v237 = vld [vmem:[%s1 + $0x20] sm:$0xff]
        %v238 = vld [vmem:[%s1 + $0x28] sm:$0xff]
        %v239 = vld [vmem:[%s1 + $0x30] sm:$0xff]
        %v240 = vld [vmem:[%s1 + $0x38] sm:$0xff]
        %v241 = vld [vmem:[%s1 + $0x40] sm:$0xff]
        %v242 = vld [vmem:[%s1 + $0x48] sm:$0xff]
        %v243 = vld [vmem:[%s1 + $0x50] sm:$0xff]
        %v244 = vld [vmem:[%s1 + $0x58] sm:$0xff]
        %v245 = vld [vmem:[%s1 + $0x60] sm:$0xff]
        %v246 = vld [vmem:[%s1 + $0x68] sm:$0xff]
        %v247 = vld [vmem:[%s1 + $0x70] sm:$0xff]
        %v248 = vld [vmem:[%s1 + $0x78] sm:$0xff]
        %v249 = vld [vmem:[%s1 + $0x80] sm:$0xff]
        %v250 = vld [vmem:[%s1 + $0x88] sm:$0xff]
        %v251 = vld [vmem:[%s1 + $0x90] sm:$0xff]
        %v252 = vld [vmem:[%s1 + $0x98] sm:$0xff]
        %v253 = vld [vmem:[%s1 + $0xa0] sm:$0xff]
        %v254 = vld [vmem:[%s1 + $0xa8] sm:$0xff]
        %v255 = vld [vmem:[%s1 + $0xb0] sm:$0xff]
        %v256 = vld [vmem:[%s1 + $0xb8] sm:$0xff]
        %v257 = vld [vmem:[%s1 + $0xc0] sm:$0xff]
        %v258 = vld [vmem:[%s1 + $0xc8] sm:$0xff]
        %v259 = vld [vmem:[%s1 + $0xd0] sm:$0xff]
        %v260 = vld [vmem:[%s1 + $0xd8] sm:$0xff]
        %v261 = vld [vmem:[%s1 + $0xe0] sm:$0xff]
        %v262 = vld [vmem:[%s1 + $0xe8] sm:$0xff]
        %v263 = vld [vmem:[%s1 + $0xf0] sm:$0xff]
        %v264 = vld [vmem:[%s1 + $0xf8] sm:$0xff]
        %265 = vmatprep.subr.mxu0 0.0
        %266 = vmatpush1.msra.mxu0 %v233
        %267 = vmatprep.subr.mxu0 0.0
        %268 = vmatpush1.msra.mxu0 %v234
        %269 = vmatprep.subr.mxu0 0.0
        %270 = vmatpush1.msra.mxu0 %v235
        %271 = vmatprep.subr.mxu0 0.0
        %272 = vmatpush1.msra.mxu0 %v236
        %273 = vmatprep.subr.mxu0 0.0
        %274 = vmatpush1.msra.mxu0 %v237
        %275 = vmatprep.subr.mxu0 0.0
        %276 = vmatpush1.msra.mxu0 %v238
        %277 = vmatprep.subr.mxu0 0.0
        %278 = vmatpush1.msra.mxu0 %v239
        %279 = vmatprep.subr.mxu0 0.0
        %280 = vmatpush1.msra.mxu0 %v240
        %281 = vmatprep.subr.mxu0 0.0
        %282 = vmatpush1.msra.mxu0 %v241
        %283 = vmatprep.subr.mxu0 0.0
        %284 = vmatpush1.msra.mxu0 %v242
        %285 = vmatprep.subr.mxu0 0.0
        %286 = vmatpush1.msra.mxu0 %v243
        %287 = vmatprep.subr.mxu0 0.0
        %288 = vmatpush1.msra.mxu0 %v244
        %289 = vmatprep.subr.mxu0 0.0
        %290 = vmatpush1.msra.mxu0 %v245
        %291 = vmatprep.subr.mxu0 0.0
        %292 = vmatpush1.msra.mxu0 %v246
        %293 = vmatprep.subr.mxu0 0.0
        %294 = vmatpush1.msra.mxu0 %v247
        %295 = vmatprep.subr.mxu0 0.0
        %296 = vmatpush1.msra.mxu0 %v248
        %297 = vmatprep.subr.mxu0 0.0
        %298 = vmatpush1.msra.mxu0 %v249
        %299 = vmatprep.subr.mxu0 0.0
        %300 = vmatpush1.msra.mxu0 %v250
        %301 = vmatprep.subr.mxu0 0.0
        %302 = vmatpush1.msra.mxu0 %v251
        %303 = vmatprep.subr.mxu0 0.0
        %304 = vmatpush1.msra.mxu0 %v252
        %305 = vmatprep.subr.mxu0 0.0
        %306 = vmatpush1.msra.mxu0 %v253
        %307 = vmatprep.subr.mxu0 0.0
        %308 = vmatpush1.msra.mxu0 %v254
        %309 = vmatprep.subr.mxu0 0.0
        %310 = vmatpush1.msra.mxu0 %v255
        %311 = vmatprep.subr.mxu0 0.0
        %312 = vmatpush1.msra.mxu0 %v256
        %313 = vmatprep.subr.mxu0 0.0
        %314 = vmatpush1.msra.mxu0 %v257
        %315 = vmatprep.subr.mxu0 0.0
        %316 = vmatpush1.msra.mxu0 %v258
        %317 = vmatprep.subr.mxu0 0.0
        %318 = vmatpush1.msra.mxu0 %v259
        %319 = vmatprep.subr.mxu0 0.0
        %320 = vmatpush1.msra.mxu0 %v260
        %321 = vmatprep.subr.mxu0 0.0
        %322 = vmatpush1.msra.mxu0 %v261
        %323 = vmatprep.subr.mxu0 0.0
        %324 = vmatpush1.msra.mxu0 %v262
        %325 = vmatprep.subr.mxu0 0.0
        %326 = vmatpush1.msra.mxu0 %v263
        %327 = vmatprep.subr.mxu0 0.0
        %328 = vmatpush1.msra.mxu0 %v264
        %329 = vmatprep.mubr.f32.mxu0 %v170
        %330 = vmatmul.mubr.f32.gmra.mrb[0].mxu0 %v169
        %v331 = vpop.f32.mrb[0].mxu0
        %v332 = vadd.f32 0.0, %v331
        %v333 = vpop.f32.mrb[0].mxu0
        %334 = vmatprep.mubr.f32.mxu0 %v172
        %335 = vmatmul.mubr.f32.gmra.mrb[0].mxu0 %v171
        %v336 = vpop.f32.mrb[0].mxu0
        %v337 = vadd.f32 0.0, %v336
        %v338 = vpop.f32.mrb[0].mxu0
        %339 = vmatprep.mubr.f32.mxu0 %v174
        %340 = vmatmul.mubr.f32.gmra.mrb[0].mxu0 %v173
        %v341 = vpop.f32.mrb[0].mxu0
        %v342 = vadd.f32 0.0, %v341
        %v343 = vpop.f32.mrb[0].mxu0
        %344 = vmatprep.mubr.f32.mxu0 %v176
        %345 = vmatmul.mubr.f32.gmra.mrb[0].mxu0 %v175
        %v346 = vpop.f32.mrb[0].mxu0
        %v347 = vadd.f32 0.0, %v346
        %v348 = vpop.f32.mrb[0].mxu0
        %349 = vmatprep.mubr.f32.mxu0 %v178
        %350 = vmatmul.mubr.f32.gmra.mrb[0].mxu0 %v177
        %v351 = vpop.f32.mrb[0].mxu0
        %v352 = vadd.f32 0.0, %v351
        %v353 = vpop.f32.mrb[0].mxu0
        %354 = vmatprep.mubr.f32.mxu0 %v180
        %355 = vmatmul.mubr.f32.gmra.mrb[0].mxu0 %v179
        %v356 = vpop.f32.mrb[0].mxu0
        %v357 = vadd.f32 0.0, %v356
        %v358 = vpop.f32.mrb[0].mxu0
        %359 = vmatprep.mubr.f32.mxu0 %v182
        %360 = vmatmul.mubr.f32.gmra.mrb[0].mxu0 %v181
        %v361 = vpop.f32.mrb[0].mxu0
        %v362 = vadd.f32 0.0, %v361
        %v363 = vpop.f32.mrb[0].mxu0
        %364 = vmatprep.mubr.f32.mxu0 %v184
        %365 = vmatmul.mubr.f32.gmra.mrb[0].mxu0 %v183
        %v366 = vpop.f32.mrb[0].mxu0
        %v367 = vadd.f32 0.0, %v366
        %v368 = vpop.f32.mrb[0].mxu0
        %369 = vmatprep.mubr.f32.mxu0 %v186
        %370 = vmatmul.mubr.f32.gmra.mrb[0].mxu0 %v185
        %v371 = vpop.f32.mrb[0].mxu0
        %v372 = vadd.f32 0.0, %v371
        %v373 = vpop.f32.mrb[0].mxu0
        %374 = vmatprep.mubr.f32.mxu0 %v188
        %375 = vmatmul.mubr.f32.gmra.mrb[0].mxu0 %v187
        %v376 = vpop.f32.mrb[0].mxu0
        %v377 = vadd.f32 0.0, %v376
        %v378 = vpop.f32.mrb[0].mxu0
        %379 = vmatprep.mubr.f32.mxu0 %v190
        %380 = vmatmul.mubr.f32.gmra.mrb[0].mxu0 %v189
        %v381 = vpop.f32.mrb[0].mxu0
        %v382 = vadd.f32 0.0, %v381
        %v383 = vpop.f32.mrb[0].mxu0
        %384 = vmatprep.mubr.f32.mxu0 %v192
        %385 = vmatmul.mubr.f32.gmra.mrb[0].mxu0 %v191
        %v386 = vpop.f32.mrb[0].mxu0
        %v387 = vadd.f32 0.0, %v386
        %v388 = vpop.f32.mrb[0].mxu0
        %389 = vmatprep.mubr.f32.mxu0 %v194
        %390 = vmatmul.mubr.f32.gmra.mrb[0].mxu0 %v193
        %v391 = vpop.f32.mrb[0].mxu0
        %v392 = vadd.f32 0.0, %v391
        %v393 = vpop.f32.mrb[0].mxu0
        %394 = vmatprep.mubr.f32.mxu0 %v196
        %395 = vmatmul.mubr.f32.gmra.mrb[0].mxu0 %v195
        %v396 = vpop.f32.mrb[0].mxu0
        %v397 = vadd.f32 0.0, %v396
        %v398 = vpop.f32.mrb[0].mxu0
        %399 = vmatprep.mubr.f32.mxu0 %v198
        %400 = vmatmul.mubr.f32.gmra.mrb[0].mxu0 %v197
        %v401 = vpop.f32.mrb[0].mxu0
        %v402 = vadd.f32 0.0, %v401
        %v403 = vpop.f32.mrb[0].mxu0
        %404 = vmatprep.mubr.f32.mxu0 %v200
        %405 = vmatmul.mubr.f32.gmra.mrb[0].mxu0 %v199
        %v406 = vpop.f32.mrb[0].mxu0
        %v407 = vadd.f32 0.0, %v406
        %v408 = vpop.f32.mrb[0].mxu0
        %409 = vmatprep.mubr.f32.mxu0 %v202
        %410 = vmatmul.mubr.f32.gmra.mrb[0].mxu0 %v201
        %v411 = vpop.f32.mrb[0].mxu0
        %v412 = vadd.f32 0.0, %v411
        %v413 = vpop.f32.mrb[0].mxu0
        %414 = vmatprep.mubr.f32.mxu0 %v204
        %415 = vmatmul.mubr.f32.gmra.mrb[0].mxu0 %v203
        %v416 = vpop.f32.mrb[0].mxu0
        %v417 = vadd.f32 0.0, %v416
        %v418 = vpop.f32.mrb[0].mxu0
        %419 = vmatprep.mubr.f32.mxu0 %v206
        %420 = vmatmul.mubr.f32.gmra.mrb[0].mxu0 %v205
        %v421 = vpop.f32.mrb[0].mxu0
        %v422 = vadd.f32 0.0, %v421
        %v423 = vpop.f32.mrb[0].mxu0
        %424 = vmatprep.mubr.f32.mxu0 %v208
        %425 = vmatmul.mubr.f32.gmra.mrb[0].mxu0 %v207
        %v426 = vpop.f32.mrb[0].mxu0
        %v427 = vadd.f32 0.0, %v426
        %v428 = vpop.f32.mrb[0].mxu0
        %429 = vmatprep.mubr.f32.mxu0 %v210
        %430 = vmatmul.mubr.f32.gmra.mrb[0].mxu0 %v209
        %v431 = vpop.f32.mrb[0].mxu0
        %v432 = vadd.f32 0.0, %v431
        %v433 = vpop.f32.mrb[0].mxu0
        %434 = vmatprep.mubr.f32.mxu0 %v212
        %435 = vmatmul.mubr.f32.gmra.mrb[0].mxu0 %v211
        %v436 = vpop.f32.mrb[0].mxu0
        %v437 = vadd.f32 0.0, %v436
        %v438 = vpop.f32.mrb[0].mxu0
        %439 = vmatprep.mubr.f32.mxu0 %v214
        %440 = vmatmul.mubr.f32.gmra.mrb[0].mxu0 %v213
        %v441 = vpop.f32.mrb[0].mxu0
        %v442 = vadd.f32 0.0, %v441
        %v443 = vpop.f32.mrb[0].mxu0
        %444 = vmatprep.mubr.f32.mxu0 %v216
        %445 = vmatmul.mubr.f32.gmra.mrb[0].mxu0 %v215
        %v446 = vpop.f32.mrb[0].mxu0
        %v447 = vadd.f32 0.0, %v446
        %v448 = vpop.f32.mrb[0].mxu0
        %449 = vmatprep.mubr.f32.mxu0 %v218
        %450 = vmatmul.mubr.f32.gmra.mrb[0].mxu0 %v217
        %v451 = vpop.f32.mrb[0].mxu0
        %v452 = vadd.f32 0.0, %v451
        %v453 = vpop.f32.mrb[0].mxu0
        %454 = vmatprep.mubr.f32.mxu0 %v220
        %455 = vmatmul.mubr.f32.gmra.mrb[0].mxu0 %v219
        %v456 = vpop.f32.mrb[0].mxu0
        %v457 = vadd.f32 0.0, %v456
        %v458 = vpop.f32.mrb[0].mxu0
        %459 = vmatprep.mubr.f32.mxu0 %v222
        %460 = vmatmul.mubr.f32.gmra.mrb[0].mxu0 %v221
        %v461 = vpop.f32.mrb[0].mxu0
        %v462 = vadd.f32 0.0, %v461
        %v463 = vpop.f32.mrb[0].mxu0
        %464 = vmatprep.mubr.f32.mxu0 %v224
        %465 = vmatmul.mubr.f32.gmra.mrb[0].mxu0 %v223
        %v466 = vpop.f32.mrb[0].mxu0
        %v467 = vadd.f32 0.0, %v466
        %v468 = vpop.f32.mrb[0].mxu0
        %469 = vmatprep.mubr.f32.mxu0 %v226
        %470 = vmatmul.mubr.f32.gmra.mrb[0].mxu0 %v225
        %v471 = vpop.f32.mrb[0].mxu0
        %v472 = vadd.f32 0.0, %v471
        %v473 = vpop.f32.mrb[0].mxu0
        %474 = vmatprep.mubr.f32.mxu0 %v228
        %475 = vmatmul.mubr.f32.gmra.mrb[0].mxu0 %v227
        %v476 = vpop.f32.mrb[0].mxu0
        %v477 = vadd.f32 0.0, %v476
        %v478 = vpop.f32.mrb[0].mxu0
        %479 = vmatprep.mubr.f32.mxu0 %v230
        %480 = vmatmul.mubr.f32.gmra.mrb[0].mxu0 %v229
        %v481 = vpop.f32.mrb[0].mxu0
        %v482 = vadd.f32 0.0, %v481
        %v483 = vpop.f32.mrb[0].mxu0
        %484 = vmatprep.mubr.f32.mxu0 %v232
        %485 = vmatmul.mubr.f32.gmra.mrb[0].mxu0 %v231
        %v486 = vpop.f32.mrb[0].mxu0
        %v487 = vadd.f32 0.0, %v486
        %v488 = vpop.f32.mrb[0].mxu0
        %489 = vdwg.mxu0
        %498 = vrot.lane.b32.xlu0 %v332, 96
        %v499 = vpop.permute.xlu0 %498
        %500 = vrot.lane.b32.xlu0 %v337, 96
        %v501 = vpop.permute.xlu0 %500
        %502 = vrot.lane.b32.xlu0 %v342, 96
        %v503 = vpop.permute.xlu0 %502
        %504 = vrot.lane.b32.xlu0 %v347, 96
        %v505 = vpop.permute.xlu0 %504
        %506 = vrot.lane.b32.xlu0 %v352, 96
        %v507 = vpop.permute.xlu0 %506
        %508 = vrot.lane.b32.xlu0 %v357, 96
        %v509 = vpop.permute.xlu0 %508
        %510 = vrot.lane.b32.xlu0 %v362, 96
        %v511 = vpop.permute.xlu0 %510
        %512 = vrot.lane.b32.xlu0 %v367, 96
        %v513 = vpop.permute.xlu0 %512
        %vm514 = vcmask 261120
        %v515 = vsel %vm514, %v332, 0
        %v517 = vsel %vm514, %v337, 0
        %v519 = vsel %vm514, %v342, 0
        %v521 = vsel %vm514, %v347, 0
        %v523 = vsel %vm514, %v352, 0
        %v525 = vsel %vm514, %v357, 0
        %v527 = vsel %vm514, %v362, 0
        %v529 = vsel %vm514, %v367, 0
        %v531 = vsel %vm514, %v499, 0
        %v533 = vsel %vm514, %v501, 0
        %v535 = vsel %vm514, %v503, 0
        %v537 = vsel %vm514, %v505, 0
        %v539 = vsel %vm514, %v507, 0
        %v541 = vsel %vm514, %v509, 0
        %v543 = vsel %vm514, %v511, 0
        %v545 = vsel %vm514, %v513, 0
        %547 = vmatprep.subr.mxu0 0.0
        %548 = vmatpush1.xpose.msra.mxu0 %v531
        %549 = vmatprep.subr.mxu0 0.0
        %550 = vmatpush1.xpose.msra.mxu0 %v533
        %551 = vmatprep.subr.mxu0 0.0
        %552 = vmatpush1.xpose.msra.mxu0 %v535
        %553 = vmatprep.subr.mxu0 0.0
        %554 = vmatpush1.xpose.msra.mxu0 %v537
        %555 = vmatprep.subr.mxu0 0.0
        %556 = vmatpush1.xpose.msra.mxu0 %v539
        %557 = vmatprep.subr.mxu0 0.0
        %558 = vmatpush1.xpose.msra.mxu0 %v541
        %559 = vmatprep.subr.mxu0 0.0
        %560 = vmatpush1.xpose.msra.mxu0 %v543
        %561 = vmatprep.subr.mxu0 0.0
        %562 = vmatpush1.xpose.msra.mxu0 %v545
        %563 = vmatprep.subr.mxu0 0.0
        %564 = vmatpush1.xpose.msra.mxu0 0.0
        %565 = vmatprep.subr.mxu0 0.0
        %566 = vmatpush1.xpose.msra.mxu0 0.0
        %567 = vmatprep.subr.mxu0 0.0
        %568 = vmatpush1.xpose.msra.mxu0 0.0
        %569 = vmatprep.subr.mxu0 0.0
        %570 = vmatpush1.xpose.msra.mxu0 0.0
        %571 = vmatprep.subr.mxu0 0.0
        %572 = vmatpush1.xpose.msra.mxu0 0.0
        %573 = vmatprep.subr.mxu0 0.0
        %574 = vmatpush1.xpose.msra.mxu0 0.0
        %575 = vmatprep.subr.mxu0 0.0
        %576 = vmatpush1.xpose.msra.mxu0 0.0
        %577 = vmatprep.subr.mxu0 0.0
        %578 = vmatpush1.xpose.msra.mxu0 0.0
        %579 = vmatprep.subr.mxu0 0.0
        %580 = vmatpush1.xpose.msra.mxu0 0.0
        %581 = vmatprep.subr.mxu0 0.0
        %582 = vmatpush1.xpose.msra.mxu0 0.0
        %583 = vmatprep.subr.mxu0 0.0
        %584 = vmatpush1.xpose.msra.mxu0 0.0
        %585 = vmatprep.subr.mxu0 0.0
        %586 = vmatpush1.xpose.msra.mxu0 0.0
        %587 = vmatprep.subr.mxu0 0.0
        %588 = vmatpush1.xpose.msra.mxu0 0.0
        %589 = vmatprep.subr.mxu0 0.0
        %590 = vmatpush1.xpose.msra.mxu0 0.0
        %591 = vmatprep.subr.mxu0 0.0
        %592 = vmatpush1.xpose.msra.mxu0 0.0
        %593 = vmatprep.subr.mxu0 0.0
        %594 = vmatpush1.xpose.msra.mxu0 0.0
        %595 = vmatprep.subr.mxu0 0.0
        %596 = vmatpush1.xpose.msra.mxu0 0.0
        %597 = vmatprep.subr.mxu0 0.0
        %598 = vmatpush1.xpose.msra.mxu0 0.0
        %599 = vmatprep.subr.mxu0 0.0
        %600 = vmatpush1.xpose.msra.mxu0 0.0
        %601 = vmatprep.subr.mxu0 0.0
        %602 = vmatpush1.xpose.msra.mxu0 0.0
        %603 = vmatprep.subr.mxu0 0.0
        %604 = vmatpush1.xpose.msra.mxu0 0.0
        %605 = vmatprep.subr.mxu0 0.0
        %606 = vmatpush1.xpose.msra.mxu0 0.0
        %607 = vmatprep.subr.mxu0 0.0
        %608 = vmatpush1.xpose.msra.mxu0 0.0
        %609 = vmatprep.subr.mxu0 0.0
        %610 = vmatpush1.xpose.msra.mxu0 0.0
        %611 = vmatprep.mubr.f32.mxu0 0.0
        %612 = vmatmul.mubr.f32.gmra.mrb[0].mxu0 %v515
        %v613 = vpop.f32.mrb[0].mxu0
        %v614 = vadd.f32 0.0, %v613
        %v615 = vpop.f32.mrb[0].mxu0
        %616 = vmatprep.mubr.f32.mxu0 0.0
        %617 = vmatmul.mubr.f32.gmra.mrb[0].mxu0 %v517
        %v618 = vpop.f32.mrb[0].mxu0
        %v619 = vadd.f32 0.0, %v618
        %v620 = vpop.f32.mrb[0].mxu0
        %621 = vmatprep.mubr.f32.mxu0 0.0
        %622 = vmatmul.mubr.f32.gmra.mrb[0].mxu0 %v519
        %v623 = vpop.f32.mrb[0].mxu0
        %v624 = vadd.f32 0.0, %v623
        %v625 = vpop.f32.mrb[0].mxu0
        %626 = vmatprep.mubr.f32.mxu0 0.0
        %627 = vmatmul.mubr.f32.gmra.mrb[0].mxu0 %v521
        %v628 = vpop.f32.mrb[0].mxu0
        %v629 = vadd.f32 0.0, %v628
        %v630 = vpop.f32.mrb[0].mxu0
        %631 = vmatprep.mubr.f32.mxu0 0.0
        %632 = vmatmul.mubr.f32.gmra.mrb[0].mxu0 %v523
        %v633 = vpop.f32.mrb[0].mxu0
        %v634 = vadd.f32 0.0, %v633
        %v635 = vpop.f32.mrb[0].mxu0
        %636 = vmatprep.mubr.f32.mxu0 0.0
        %637 = vmatmul.mubr.f32.gmra.mrb[0].mxu0 %v525
        %v638 = vpop.f32.mrb[0].mxu0
        %v639 = vadd.f32 0.0, %v638
        %v640 = vpop.f32.mrb[0].mxu0
        %641 = vmatprep.mubr.f32.mxu0 0.0
        %642 = vmatmul.mubr.f32.gmra.mrb[0].mxu0 %v527
        %v643 = vpop.f32.mrb[0].mxu0
        %v644 = vadd.f32 0.0, %v643
        %v645 = vpop.f32.mrb[0].mxu0
        %646 = vmatprep.mubr.f32.mxu0 0.0
        %647 = vmatmul.mubr.f32.gmra.mrb[0].mxu0 %v529
        %v648 = vpop.f32.mrb[0].mxu0
        %v649 = vadd.f32 0.0, %v648
        %v650 = vpop.f32.mrb[0].mxu0
        %651 = vdwg.mxu0
        %660 = vrot.lane.b32.xlu0 %v372, 96
        %v661 = vpop.permute.xlu0 %660
        %662 = vrot.lane.b32.xlu0 %v377, 96
        %v663 = vpop.permute.xlu0 %662
        %664 = vrot.lane.b32.xlu0 %v382, 96
        %v665 = vpop.permute.xlu0 %664
        %666 = vrot.lane.b32.xlu0 %v387, 96
        %v667 = vpop.permute.xlu0 %666
        %668 = vrot.lane.b32.xlu0 %v392, 96
        %v669 = vpop.permute.xlu0 %668
        %670 = vrot.lane.b32.xlu0 %v397, 96
        %v671 = vpop.permute.xlu0 %670
        %672 = vrot.lane.b32.xlu0 %v402, 96
        %v673 = vpop.permute.xlu0 %672
        %674 = vrot.lane.b32.xlu0 %v407, 96
        %v675 = vpop.permute.xlu0 %674
        %v676 = vsel %vm514, %v372, 0
        %v678 = vsel %vm514, %v377, 0
        %v680 = vsel %vm514, %v382, 0
        %v682 = vsel %vm514, %v387, 0
        %v684 = vsel %vm514, %v392, 0
        %v686 = vsel %vm514, %v397, 0
        %v688 = vsel %vm514, %v402, 0
        %v690 = vsel %vm514, %v407, 0
        %v692 = vsel %vm514, %v661, 0
        %v694 = vsel %vm514, %v663, 0
        %v696 = vsel %vm514, %v665, 0
        %v698 = vsel %vm514, %v667, 0
        %v700 = vsel %vm514, %v669, 0
        %v702 = vsel %vm514, %v671, 0
        %v704 = vsel %vm514, %v673, 0
        %v706 = vsel %vm514, %v675, 0
        %708 = vmatprep.subr.mxu0 0.0
        %709 = vmatpush1.xpose.msra.mxu0 %v692
        %710 = vmatprep.subr.mxu0 0.0
        %711 = vmatpush1.xpose.msra.mxu0 %v694
        %712 = vmatprep.subr.mxu0 0.0
        %713 = vmatpush1.xpose.msra.mxu0 %v696
        %714 = vmatprep.subr.mxu0 0.0
        %715 = vmatpush1.xpose.msra.mxu0 %v698
        %716 = vmatprep.subr.mxu0 0.0
        %717 = vmatpush1.xpose.msra.mxu0 %v700
        %718 = vmatprep.subr.mxu0 0.0
        %719 = vmatpush1.xpose.msra.mxu0 %v702
        %720 = vmatprep.subr.mxu0 0.0
        %721 = vmatpush1.xpose.msra.mxu0 %v704
        %722 = vmatprep.subr.mxu0 0.0
        %723 = vmatpush1.xpose.msra.mxu0 %v706
        %724 = vmatprep.subr.mxu0 0.0
        %725 = vmatpush1.xpose.msra.mxu0 0.0
        %726 = vmatprep.subr.mxu0 0.0
        %727 = vmatpush1.xpose.msra.mxu0 0.0
        %728 = vmatprep.subr.mxu0 0.0
        %729 = vmatpush1.xpose.msra.mxu0 0.0
        %730 = vmatprep.subr.mxu0 0.0
        %731 = vmatpush1.xpose.msra.mxu0 0.0
        %732 = vmatprep.subr.mxu0 0.0
        %733 = vmatpush1.xpose.msra.mxu0 0.0
        %734 = vmatprep.subr.mxu0 0.0
        %735 = vmatpush1.xpose.msra.mxu0 0.0
        %736 = vmatprep.subr.mxu0 0.0
        %737 = vmatpush1.xpose.msra.mxu0 0.0
        %738 = vmatprep.subr.mxu0 0.0
        %739 = vmatpush1.xpose.msra.mxu0 0.0
        %740 = vmatprep.subr.mxu0 0.0
        %741 = vmatpush1.xpose.msra.mxu0 0.0
        %742 = vmatprep.subr.mxu0 0.0
        %743 = vmatpush1.xpose.msra.mxu0 0.0
        %744 = vmatprep.subr.mxu0 0.0
        %745 = vmatpush1.xpose.msra.mxu0 0.0
        %746 = vmatprep.subr.mxu0 0.0
        %747 = vmatpush1.xpose.msra.mxu0 0.0
        %748 = vmatprep.subr.mxu0 0.0
        %749 = vmatpush1.xpose.msra.mxu0 0.0
        %750 = vmatprep.subr.mxu0 0.0
        %751 = vmatpush1.xpose.msra.mxu0 0.0
        %752 = vmatprep.subr.mxu0 0.0
        %753 = vmatpush1.xpose.msra.mxu0 0.0
        %754 = vmatprep.subr.mxu0 0.0
        %755 = vmatpush1.xpose.msra.mxu0 0.0
        %756 = vmatprep.subr.mxu0 0.0
        %757 = vmatpush1.xpose.msra.mxu0 0.0
        %758 = vmatprep.subr.mxu0 0.0
        %759 = vmatpush1.xpose.msra.mxu0 0.0
        %760 = vmatprep.subr.mxu0 0.0
        %761 = vmatpush1.xpose.msra.mxu0 0.0
        %762 = vmatprep.subr.mxu0 0.0
        %763 = vmatpush1.xpose.msra.mxu0 0.0
        %764 = vmatprep.subr.mxu0 0.0
        %765 = vmatpush1.xpose.msra.mxu0 0.0
        %766 = vmatprep.subr.mxu0 0.0
        %767 = vmatpush1.xpose.msra.mxu0 0.0
        %768 = vmatprep.subr.mxu0 0.0
        %769 = vmatpush1.xpose.msra.mxu0 0.0
        %770 = vmatprep.subr.mxu0 0.0
        %771 = vmatpush1.xpose.msra.mxu0 0.0
        %772 = vmatprep.mubr.f32.mxu0 0.0
        %773 = vmatmul.mubr.f32.gmra.mrb[0].mxu0 %v676
        %v774 = vpop.f32.mrb[0].mxu0
        %v775 = vadd.f32 0.0, %v774
        %v776 = vpop.f32.mrb[0].mxu0
        %777 = vmatprep.mubr.f32.mxu0 0.0
        %778 = vmatmul.mubr.f32.gmra.mrb[0].mxu0 %v678
        %v779 = vpop.f32.mrb[0].mxu0
        %v780 = vadd.f32 0.0, %v779
        %v781 = vpop.f32.mrb[0].mxu0
        %782 = vmatprep.mubr.f32.mxu0 0.0
        %783 = vmatmul.mubr.f32.gmra.mrb[0].mxu0 %v680
        %v784 = vpop.f32.mrb[0].mxu0
        %v785 = vadd.f32 0.0, %v784
        %v786 = vpop.f32.mrb[0].mxu0
        %787 = vmatprep.mubr.f32.mxu0 0.0
        %788 = vmatmul.mubr.f32.gmra.mrb[0].mxu0 %v682
        %v789 = vpop.f32.mrb[0].mxu0
        %v790 = vadd.f32 0.0, %v789
        %v791 = vpop.f32.mrb[0].mxu0
        %792 = vmatprep.mubr.f32.mxu0 0.0
        %793 = vmatmul.mubr.f32.gmra.mrb[0].mxu0 %v684
        %v794 = vpop.f32.mrb[0].mxu0
        %v795 = vadd.f32 0.0, %v794
        %v796 = vpop.f32.mrb[0].mxu0
        %797 = vmatprep.mubr.f32.mxu0 0.0
        %798 = vmatmul.mubr.f32.gmra.mrb[0].mxu0 %v686
        %v799 = vpop.f32.mrb[0].mxu0
        %v800 = vadd.f32 0.0, %v799
        %v801 = vpop.f32.mrb[0].mxu0
        %802 = vmatprep.mubr.f32.mxu0 0.0
        %803 = vmatmul.mubr.f32.gmra.mrb[0].mxu0 %v688
        %v804 = vpop.f32.mrb[0].mxu0
        %v805 = vadd.f32 0.0, %v804
        %v806 = vpop.f32.mrb[0].mxu0
        %807 = vmatprep.mubr.f32.mxu0 0.0
        %808 = vmatmul.mubr.f32.gmra.mrb[0].mxu0 %v690
        %v809 = vpop.f32.mrb[0].mxu0
        %v810 = vadd.f32 0.0, %v809
        %v811 = vpop.f32.mrb[0].mxu0
        %812 = vdwg.mxu0
        %821 = vrot.lane.b32.xlu0 %v412, 96
        %v822 = vpop.permute.xlu0 %821
        %823 = vrot.lane.b32.xlu0 %v417, 96
        %v824 = vpop.permute.xlu0 %823
        %825 = vrot.lane.b32.xlu0 %v422, 96
        %v826 = vpop.permute.xlu0 %825
        %827 = vrot.lane.b32.xlu0 %v427, 96
        %v828 = vpop.permute.xlu0 %827
        %829 = vrot.lane.b32.xlu0 %v432, 96
        %v830 = vpop.permute.xlu0 %829
        %831 = vrot.lane.b32.xlu0 %v437, 96
        %v832 = vpop.permute.xlu0 %831
        %833 = vrot.lane.b32.xlu0 %v442, 96
        %v834 = vpop.permute.xlu0 %833
        %835 = vrot.lane.b32.xlu0 %v447, 96
        %v836 = vpop.permute.xlu0 %835
        %v837 = vsel %vm514, %v412, 0
        %v839 = vsel %vm514, %v417, 0
        %v841 = vsel %vm514, %v422, 0
        %v843 = vsel %vm514, %v427, 0
        %v845 = vsel %vm514, %v432, 0
        %v847 = vsel %vm514, %v437, 0
        %v849 = vsel %vm514, %v442, 0
        %v851 = vsel %vm514, %v447, 0
        %v853 = vsel %vm514, %v822, 0
        %v855 = vsel %vm514, %v824, 0
        %v857 = vsel %vm514, %v826, 0
        %v859 = vsel %vm514, %v828, 0
        %v861 = vsel %vm514, %v830, 0
        %v863 = vsel %vm514, %v832, 0
        %v865 = vsel %vm514, %v834, 0
        %v867 = vsel %vm514, %v836, 0
        %869 = vmatprep.subr.mxu0 0.0
        %870 = vmatpush1.xpose.msra.mxu0 %v853
        %871 = vmatprep.subr.mxu0 0.0
        %872 = vmatpush1.xpose.msra.mxu0 %v855
        %873 = vmatprep.subr.mxu0 0.0
        %874 = vmatpush1.xpose.msra.mxu0 %v857
        %875 = vmatprep.subr.mxu0 0.0
        %876 = vmatpush1.xpose.msra.mxu0 %v859
        %877 = vmatprep.subr.mxu0 0.0
        %878 = vmatpush1.xpose.msra.mxu0 %v861
        %879 = vmatprep.subr.mxu0 0.0
        %880 = vmatpush1.xpose.msra.mxu0 %v863
        %881 = vmatprep.subr.mxu0 0.0
        %882 = vmatpush1.xpose.msra.mxu0 %v865
        %883 = vmatprep.subr.mxu0 0.0
        %884 = vmatpush1.xpose.msra.mxu0 %v867
        %885 = vmatprep.subr.mxu0 0.0
        %886 = vmatpush1.xpose.msra.mxu0 0.0
        %887 = vmatprep.subr.mxu0 0.0
        %888 = vmatpush1.xpose.msra.mxu0 0.0
        %889 = vmatprep.subr.mxu0 0.0
        %890 = vmatpush1.xpose.msra.mxu0 0.0
        %891 = vmatprep.subr.mxu0 0.0
        %892 = vmatpush1.xpose.msra.mxu0 0.0
        %893 = vmatprep.subr.mxu0 0.0
        %894 = vmatpush1.xpose.msra.mxu0 0.0
        %895 = vmatprep.subr.mxu0 0.0
        %896 = vmatpush1.xpose.msra.mxu0 0.0
        %897 = vmatprep.subr.mxu0 0.0
        %898 = vmatpush1.xpose.msra.mxu0 0.0
        %899 = vmatprep.subr.mxu0 0.0
        %900 = vmatpush1.xpose.msra.mxu0 0.0
        %901 = vmatprep.subr.mxu0 0.0
        %902 = vmatpush1.xpose.msra.mxu0 0.0
        %903 = vmatprep.subr.mxu0 0.0
        %904 = vmatpush1.xpose.msra.mxu0 0.0
        %905 = vmatprep.subr.mxu0 0.0
        %906 = vmatpush1.xpose.msra.mxu0 0.0
        %907 = vmatprep.subr.mxu0 0.0
        %908 = vmatpush1.xpose.msra.mxu0 0.0
        %909 = vmatprep.subr.mxu0 0.0
        %910 = vmatpush1.xpose.msra.mxu0 0.0
        %911 = vmatprep.subr.mxu0 0.0
        %912 = vmatpush1.xpose.msra.mxu0 0.0
        %913 = vmatprep.subr.mxu0 0.0
        %914 = vmatpush1.xpose.msra.mxu0 0.0
        %915 = vmatprep.subr.mxu0 0.0
        %916 = vmatpush1.xpose.msra.mxu0 0.0
        %917 = vmatprep.subr.mxu0 0.0
        %918 = vmatpush1.xpose.msra.mxu0 0.0
        %919 = vmatprep.subr.mxu0 0.0
        %920 = vmatpush1.xpose.msra.mxu0 0.0
        %921 = vmatprep.subr.mxu0 0.0
        %922 = vmatpush1.xpose.msra.mxu0 0.0
        %923 = vmatprep.subr.mxu0 0.0
        %924 = vmatpush1.xpose.msra.mxu0 0.0
        %925 = vmatprep.subr.mxu0 0.0
        %926 = vmatpush1.xpose.msra.mxu0 0.0
        %927 = vmatprep.subr.mxu0 0.0
        %928 = vmatpush1.xpose.msra.mxu0 0.0
        %929 = vmatprep.subr.mxu0 0.0
        %930 = vmatpush1.xpose.msra.mxu0 0.0
        %931 = vmatprep.subr.mxu0 0.0
        %932 = vmatpush1.xpose.msra.mxu0 0.0
        %933 = vmatprep.mubr.f32.mxu0 0.0
        %934 = vmatmul.mubr.f32.gmra.mrb[0].mxu0 %v837
        %v935 = vpop.f32.mrb[0].mxu0
        %v936 = vadd.f32 0.0, %v935
        %v937 = vpop.f32.mrb[0].mxu0
        %938 = vmatprep.mubr.f32.mxu0 0.0
        %939 = vmatmul.mubr.f32.gmra.mrb[0].mxu0 %v839
        %v940 = vpop.f32.mrb[0].mxu0
        %v941 = vadd.f32 0.0, %v940
        %v942 = vpop.f32.mrb[0].mxu0
        %943 = vmatprep.mubr.f32.mxu0 0.0
        %944 = vmatmul.mubr.f32.gmra.mrb[0].mxu0 %v841
        %v945 = vpop.f32.mrb[0].mxu0
        %v946 = vadd.f32 0.0, %v945
        %v947 = vpop.f32.mrb[0].mxu0
        %948 = vmatprep.mubr.f32.mxu0 0.0
        %949 = vmatmul.mubr.f32.gmra.mrb[0].mxu0 %v843
        %v950 = vpop.f32.mrb[0].mxu0
        %v951 = vadd.f32 0.0, %v950
        %v952 = vpop.f32.mrb[0].mxu0
        %953 = vmatprep.mubr.f32.mxu0 0.0
        %954 = vmatmul.mubr.f32.gmra.mrb[0].mxu0 %v845
        %v955 = vpop.f32.mrb[0].mxu0
        %v956 = vadd.f32 0.0, %v955
        %v957 = vpop.f32.mrb[0].mxu0
        %958 = vmatprep.mubr.f32.mxu0 0.0
        %959 = vmatmul.mubr.f32.gmra.mrb[0].mxu0 %v847
        %v960 = vpop.f32.mrb[0].mxu0
        %v961 = vadd.f32 0.0, %v960
        %v962 = vpop.f32.mrb[0].mxu0
        %963 = vmatprep.mubr.f32.mxu0 0.0
        %964 = vmatmul.mubr.f32.gmra.mrb[0].mxu0 %v849
        %v965 = vpop.f32.mrb[0].mxu0
        %v966 = vadd.f32 0.0, %v965
        %v967 = vpop.f32.mrb[0].mxu0
        %968 = vmatprep.mubr.f32.mxu0 0.0
        %969 = vmatmul.mubr.f32.gmra.mrb[0].mxu0 %v851
        %v970 = vpop.f32.mrb[0].mxu0
        %v971 = vadd.f32 0.0, %v970
        %v972 = vpop.f32.mrb[0].mxu0
        %973 = vdwg.mxu0
        %982 = vrot.lane.b32.xlu0 %v452, 96
        %v983 = vpop.permute.xlu0 %982
        %984 = vrot.lane.b32.xlu0 %v457, 96
        %v985 = vpop.permute.xlu0 %984
        %986 = vrot.lane.b32.xlu0 %v462, 96
        %v987 = vpop.permute.xlu0 %986
        %988 = vrot.lane.b32.xlu0 %v467, 96
        %v989 = vpop.permute.xlu0 %988
        %990 = vrot.lane.b32.xlu0 %v472, 96
        %v991 = vpop.permute.xlu0 %990
        %992 = vrot.lane.b32.xlu0 %v477, 96
        %v993 = vpop.permute.xlu0 %992
        %994 = vrot.lane.b32.xlu0 %v482, 96
        %v995 = vpop.permute.xlu0 %994
        %996 = vrot.lane.b32.xlu0 %v487, 96
        %v997 = vpop.permute.xlu0 %996
        %v998 = vsel %vm514, %v452, 0
        %v1000 = vsel %vm514, %v457, 0
        %v1002 = vsel %vm514, %v462, 0
        %v1004 = vsel %vm514, %v467, 0
        %v1006 = vsel %vm514, %v472, 0
        %v1008 = vsel %vm514, %v477, 0
        %v1010 = vsel %vm514, %v482, 0
        %v1012 = vsel %vm514, %v487, 0
        %v1014 = vsel %vm514, %v983, 0
        %v1016 = vsel %vm514, %v985, 0
        %v1018 = vsel %vm514, %v987, 0
        %v1020 = vsel %vm514, %v989, 0
        %v1022 = vsel %vm514, %v991, 0
        %v1024 = vsel %vm514, %v993, 0
        %v1026 = vsel %vm514, %v995, 0
        %v1028 = vsel %vm514, %v997, 0
        %1030 = vmatprep.subr.mxu0 0.0
        %1031 = vmatpush1.xpose.msra.mxu0 %v1014
        %1032 = vmatprep.subr.mxu0 0.0
        %1033 = vmatpush1.xpose.msra.mxu0 %v1016
        %1034 = vmatprep.subr.mxu0 0.0
        %1035 = vmatpush1.xpose.msra.mxu0 %v1018
        %1036 = vmatprep.subr.mxu0 0.0
        %1037 = vmatpush1.xpose.msra.mxu0 %v1020
        %1038 = vmatprep.subr.mxu0 0.0
        %1039 = vmatpush1.xpose.msra.mxu0 %v1022
        %1040 = vmatprep.subr.mxu0 0.0
        %1041 = vmatpush1.xpose.msra.mxu0 %v1024
        %1042 = vmatprep.subr.mxu0 0.0
        %1043 = vmatpush1.xpose.msra.mxu0 %v1026
        %1044 = vmatprep.subr.mxu0 0.0
        %1045 = vmatpush1.xpose.msra.mxu0 %v1028
        %1046 = vmatprep.subr.mxu0 0.0
        %1047 = vmatpush1.xpose.msra.mxu0 0.0
        %1048 = vmatprep.subr.mxu0 0.0
        %1049 = vmatpush1.xpose.msra.mxu0 0.0
        %1050 = vmatprep.subr.mxu0 0.0
        %1051 = vmatpush1.xpose.msra.mxu0 0.0
        %1052 = vmatprep.subr.mxu0 0.0
        %1053 = vmatpush1.xpose.msra.mxu0 0.0
        %1054 = vmatprep.subr.mxu0 0.0
        %1055 = vmatpush1.xpose.msra.mxu0 0.0
        %1056 = vmatprep.subr.mxu0 0.0
        %1057 = vmatpush1.xpose.msra.mxu0 0.0
        %1058 = vmatprep.subr.mxu0 0.0
        %1059 = vmatpush1.xpose.msra.mxu0 0.0
        %1060 = vmatprep.subr.mxu0 0.0
        %1061 = vmatpush1.xpose.msra.mxu0 0.0
        %1062 = vmatprep.subr.mxu0 0.0
        %1063 = vmatpush1.xpose.msra.mxu0 0.0
        %1064 = vmatprep.subr.mxu0 0.0
        %1065 = vmatpush1.xpose.msra.mxu0 0.0
        %1066 = vmatprep.subr.mxu0 0.0
        %1067 = vmatpush1.xpose.msra.mxu0 0.0
        %1068 = vmatprep.subr.mxu0 0.0
        %1069 = vmatpush1.xpose.msra.mxu0 0.0
        %1070 = vmatprep.subr.mxu0 0.0
        %1071 = vmatpush1.xpose.msra.mxu0 0.0
        %1072 = vmatprep.subr.mxu0 0.0
        %1073 = vmatpush1.xpose.msra.mxu0 0.0
        %1074 = vmatprep.subr.mxu0 0.0
        %1075 = vmatpush1.xpose.msra.mxu0 0.0
        %1076 = vmatprep.subr.mxu0 0.0
        %1077 = vmatpush1.xpose.msra.mxu0 0.0
        %1078 = vmatprep.subr.mxu0 0.0
        %1079 = vmatpush1.xpose.msra.mxu0 0.0
        %1080 = vmatprep.subr.mxu0 0.0
        %1081 = vmatpush1.xpose.msra.mxu0 0.0
        %1082 = vmatprep.subr.mxu0 0.0
        %1083 = vmatpush1.xpose.msra.mxu0 0.0
        %1084 = vmatprep.subr.mxu0 0.0
        %1085 = vmatpush1.xpose.msra.mxu0 0.0
        %1086 = vmatprep.subr.mxu0 0.0
        %1087 = vmatpush1.xpose.msra.mxu0 0.0
        %1088 = vmatprep.subr.mxu0 0.0
        %1089 = vmatpush1.xpose.msra.mxu0 0.0
        %1090 = vmatprep.subr.mxu0 0.0
        %1091 = vmatpush1.xpose.msra.mxu0 0.0
        %1092 = vmatprep.subr.mxu0 0.0
        %1093 = vmatpush1.xpose.msra.mxu0 0.0
        %1094 = vmatprep.mubr.f32.mxu0 0.0
        %1095 = vmatmul.mubr.f32.gmra.mrb[0].mxu0 %v998
        %v1096 = vpop.f32.mrb[0].mxu0
        %v1097 = vadd.f32 0.0, %v1096
        %v1098 = vpop.f32.mrb[0].mxu0
        %1099 = vmatprep.mubr.f32.mxu0 0.0
        %1100 = vmatmul.mubr.f32.gmra.mrb[0].mxu0 %v1000
        %v1101 = vpop.f32.mrb[0].mxu0
        %v1102 = vadd.f32 0.0, %v1101
        %v1103 = vpop.f32.mrb[0].mxu0
        %1104 = vmatprep.mubr.f32.mxu0 0.0
        %1105 = vmatmul.mubr.f32.gmra.mrb[0].mxu0 %v1002
        %v1106 = vpop.f32.mrb[0].mxu0
        %v1107 = vadd.f32 0.0, %v1106
        %v1108 = vpop.f32.mrb[0].mxu0
        %1109 = vmatprep.mubr.f32.mxu0 0.0
        %1110 = vmatmul.mubr.f32.gmra.mrb[0].mxu0 %v1004
        %v1111 = vpop.f32.mrb[0].mxu0
        %v1112 = vadd.f32 0.0, %v1111
        %v1113 = vpop.f32.mrb[0].mxu0
        %1114 = vmatprep.mubr.f32.mxu0 0.0
        %1115 = vmatmul.mubr.f32.gmra.mrb[0].mxu0 %v1006
        %v1116 = vpop.f32.mrb[0].mxu0
        %v1117 = vadd.f32 0.0, %v1116
        %v1118 = vpop.f32.mrb[0].mxu0
        %1119 = vmatprep.mubr.f32.mxu0 0.0
        %1120 = vmatmul.mubr.f32.gmra.mrb[0].mxu0 %v1008
        %v1121 = vpop.f32.mrb[0].mxu0
        %v1122 = vadd.f32 0.0, %v1121
        %v1123 = vpop.f32.mrb[0].mxu0
        %1124 = vmatprep.mubr.f32.mxu0 0.0
        %1125 = vmatmul.mubr.f32.gmra.mrb[0].mxu0 %v1010
        %v1126 = vpop.f32.mrb[0].mxu0
        %v1127 = vadd.f32 0.0, %v1126
        %v1128 = vpop.f32.mrb[0].mxu0
        %1129 = vmatprep.mubr.f32.mxu0 0.0
        %1130 = vmatmul.mubr.f32.gmra.mrb[0].mxu0 %v1012
        %v1131 = vpop.f32.mrb[0].mxu0
        %v1132 = vadd.f32 0.0, %v1131
        %v1133 = vpop.f32.mrb[0].mxu0
        %1134 = vdwg.mxu0
        %v1135 = vlaneseq
        %v1136 = vshrl.u32 %v1135, 7
        %v1137 = vadd.s32 %v1136, 8
        %v1138 = vadd.s32 %v1136, 16
        %v1139 = vadd.s32 %v1136, 24
        %v1140 = vadd.s32 %v1136, 32
        %v1141 = vadd.s32 %v1136, 40
        %v1142 = vadd.s32 %v1136, 48
        %v1143 = vadd.s32 %v1136, 56
        %v1144 = vlaneseq
        %v1145 = vand.u32 %v1144, 127
        %vm1146 = vcmp.ge.s32.totalorder %v1136, %v1145
        %vm1147 = vcmp.ge.s32.totalorder %v1137, %v1145
        %vm1148 = vcmp.ge.s32.totalorder %v1138, %v1145
        %vm1149 = vcmp.ge.s32.totalorder %v1139, %v1145
        %vm1150 = vcmp.ge.s32.totalorder %v1140, %v1145
        %vm1151 = vcmp.ge.s32.totalorder %v1141, %v1145
        %vm1152 = vcmp.ge.s32.totalorder %v1142, %v1145
        %vm1153 = vcmp.ge.s32.totalorder %v1143, %v1145
        %v1154 = vsel %vm1146, 1, 0
        %v1155 = vsel %vm1147, 1, 0
        %v1156 = vsel %vm1148, 1, 0
        %v1157 = vsel %vm1149, 1, 0
        %v1158 = vsel %vm1150, 1, 0
        %v1159 = vsel %vm1151, 1, 0
        %v1160 = vsel %vm1152, 1, 0
        %v1161 = vsel %vm1153, 1, 0
        %vm1162 = vcmp.eq.s32.totalorder %v1154, 1
        %vm1163 = vcmp.eq.s32.totalorder %v1155, 1
        %vm1164 = vcmp.eq.s32.totalorder %v1156, 1
        %vm1165 = vcmp.eq.s32.totalorder %v1157, 1
        %vm1166 = vcmp.eq.s32.totalorder %v1158, 1
        %vm1167 = vcmp.eq.s32.totalorder %v1159, 1
        %vm1168 = vcmp.eq.s32.totalorder %v1160, 1
        %vm1169 = vcmp.eq.s32.totalorder %v1161, 1
        %v1170 = vsel %vm1162, %v614, -inf
        %v1171 = vsel %vm1163, %v619, -inf
        %v1172 = vsel %vm1164, %v624, -inf
        %v1173 = vsel %vm1165, %v629, -inf
        %v1174 = vsel %vm1166, %v634, -inf
        %v1175 = vsel %vm1167, %v639, -inf
        %v1176 = vsel %vm1168, %v644, -inf
        %v1177 = vsel %vm1169, %v649, -inf
        %v1178 = vsel %vm1162, %v775, -inf
        %v1179 = vsel %vm1163, %v780, -inf
        %v1180 = vsel %vm1164, %v785, -inf
        %v1181 = vsel %vm1165, %v790, -inf
        %v1182 = vsel %vm1166, %v795, -inf
        %v1183 = vsel %vm1167, %v800, -inf
        %v1184 = vsel %vm1168, %v805, -inf
        %v1185 = vsel %vm1169, %v810, -inf
        %v1186 = vsel %vm1162, %v936, -inf
        %v1187 = vsel %vm1163, %v941, -inf
        %v1188 = vsel %vm1164, %v946, -inf
        %v1189 = vsel %vm1165, %v951, -inf
        %v1190 = vsel %vm1166, %v956, -inf
        %v1191 = vsel %vm1167, %v961, -inf
        %v1192 = vsel %vm1168, %v966, -inf
        %v1193 = vsel %vm1169, %v971, -inf
        %v1194 = vsel %vm1162, %v1097, -inf
        %v1195 = vsel %vm1163, %v1102, -inf
        %v1196 = vsel %vm1164, %v1107, -inf
        %v1197 = vsel %vm1165, %v1112, -inf
        %v1198 = vsel %vm1166, %v1117, -inf
        %v1199 = vsel %vm1167, %v1122, -inf
        %v1200 = vsel %vm1168, %v1127, -inf
        %v1201 = vsel %vm1169, %v1132, -inf
        %vm1202 = vcmask 523264
        %v1203 = vsel %vm1202, %v1170, -inf
        %1204 = vmax.xlane.f32.xlu0 %v1203
        %v1205 = vpop.xlane.xlu0 %1204
        %v1206 = vsel %vm1202, %v1171, -inf
        %1207 = vmax.xlane.f32.xlu0 %v1206
        %v1208 = vpop.xlane.xlu0 %1207
        %v1209 = vsel %vm1202, %v1172, -inf
        %1210 = vmax.xlane.f32.xlu0 %v1209
        %v1211 = vpop.xlane.xlu0 %1210
        %v1212 = vsel %vm1202, %v1173, -inf
        %1213 = vmax.xlane.f32.xlu0 %v1212
        %v1214 = vpop.xlane.xlu0 %1213
        %v1215 = vsel %vm1202, %v1174, -inf
        %1216 = vmax.xlane.f32.xlu0 %v1215
        %v1217 = vpop.xlane.xlu0 %1216
        %v1218 = vsel %vm1202, %v1175, -inf
        %1219 = vmax.xlane.f32.xlu0 %v1218
        %v1220 = vpop.xlane.xlu0 %1219
        %v1221 = vsel %vm1202, %v1176, -inf
        %1222 = vmax.xlane.f32.xlu0 %v1221
        %v1223 = vpop.xlane.xlu0 %1222
        %v1224 = vsel %vm1202, %v1177, -inf
        %1225 = vmax.xlane.f32.xlu0 %v1224
        %v1226 = vpop.xlane.xlu0 %1225
        %v1227 = vsel %vm1202, %v1178, -inf
        %1228 = vmax.xlane.f32.xlu0 %v1227
        %v1229 = vpop.xlane.xlu0 %1228
        %v1230 = vsel %vm1202, %v1179, -inf
        %1231 = vmax.xlane.f32.xlu0 %v1230
        %v1232 = vpop.xlane.xlu0 %1231
        %v1233 = vsel %vm1202, %v1180, -inf
        %1234 = vmax.xlane.f32.xlu0 %v1233
        %v1235 = vpop.xlane.xlu0 %1234
        %v1236 = vsel %vm1202, %v1181, -inf
        %1237 = vmax.xlane.f32.xlu0 %v1236
        %v1238 = vpop.xlane.xlu0 %1237
        %v1239 = vsel %vm1202, %v1182, -inf
        %1240 = vmax.xlane.f32.xlu0 %v1239
        %v1241 = vpop.xlane.xlu0 %1240
        %v1242 = vsel %vm1202, %v1183, -inf
        %1243 = vmax.xlane.f32.xlu0 %v1242
        %v1244 = vpop.xlane.xlu0 %1243
        %v1245 = vsel %vm1202, %v1184, -inf
        %1246 = vmax.xlane.f32.xlu0 %v1245
        %v1247 = vpop.xlane.xlu0 %1246
        %v1248 = vsel %vm1202, %v1185, -inf
        %1249 = vmax.xlane.f32.xlu0 %v1248
        %v1250 = vpop.xlane.xlu0 %1249
        %v1251 = vsel %vm1202, %v1186, -inf
        %1252 = vmax.xlane.f32.xlu0 %v1251
        %v1253 = vpop.xlane.xlu0 %1252
        %v1254 = vsel %vm1202, %v1187, -inf
        %1255 = vmax.xlane.f32.xlu0 %v1254
        %v1256 = vpop.xlane.xlu0 %1255
        %v1257 = vsel %vm1202, %v1188, -inf
        %1258 = vmax.xlane.f32.xlu0 %v1257
        %v1259 = vpop.xlane.xlu0 %1258
        %v1260 = vsel %vm1202, %v1189, -inf
        %1261 = vmax.xlane.f32.xlu0 %v1260
        %v1262 = vpop.xlane.xlu0 %1261
        %v1263 = vsel %vm1202, %v1190, -inf
        %1264 = vmax.xlane.f32.xlu0 %v1263
        %v1265 = vpop.xlane.xlu0 %1264
        %v1266 = vsel %vm1202, %v1191, -inf
        %1267 = vmax.xlane.f32.xlu0 %v1266
        %v1268 = vpop.xlane.xlu0 %1267
        %v1269 = vsel %vm1202, %v1192, -inf
        %1270 = vmax.xlane.f32.xlu0 %v1269
        %v1271 = vpop.xlane.xlu0 %1270
        %v1272 = vsel %vm1202, %v1193, -inf
        %1273 = vmax.xlane.f32.xlu0 %v1272
        %v1274 = vpop.xlane.xlu0 %1273
        %v1275 = vsel %vm1202, %v1194, -inf
        %1276 = vmax.xlane.f32.xlu0 %v1275
        %v1277 = vpop.xlane.xlu0 %1276
        %v1278 = vsel %vm1202, %v1195, -inf
        %1279 = vmax.xlane.f32.xlu0 %v1278
        %v1280 = vpop.xlane.xlu0 %1279
        %v1281 = vsel %vm1202, %v1196, -inf
        %1282 = vmax.xlane.f32.xlu0 %v1281
        %v1283 = vpop.xlane.xlu0 %1282
        %v1284 = vsel %vm1202, %v1197, -inf
        %1285 = vmax.xlane.f32.xlu0 %v1284
        %v1286 = vpop.xlane.xlu0 %1285
        %v1287 = vsel %vm1202, %v1198, -inf
        %1288 = vmax.xlane.f32.xlu0 %v1287
        %v1289 = vpop.xlane.xlu0 %1288
        %v1290 = vsel %vm1202, %v1199, -inf
        %1291 = vmax.xlane.f32.xlu0 %v1290
        %v1292 = vpop.xlane.xlu0 %1291
        %v1293 = vsel %vm1202, %v1200, -inf
        %1294 = vmax.xlane.f32.xlu0 %v1293
        %v1295 = vpop.xlane.xlu0 %1294
        %v1296 = vsel %vm1202, %v1201, -inf
        %1297 = vmax.xlane.f32.xlu0 %v1296
        %v1298 = vpop.xlane.xlu0 %1297
        %v1299 = vsub.f32 %v1170, %v1205
        %v1300 = vsub.f32 %v1171, %v1208
        %v1301 = vsub.f32 %v1172, %v1211
        %v1302 = vsub.f32 %v1173, %v1214
        %v1303 = vsub.f32 %v1174, %v1217
        %v1304 = vsub.f32 %v1175, %v1220
        %v1305 = vsub.f32 %v1176, %v1223
        %v1306 = vsub.f32 %v1177, %v1226
        %v1307 = vsub.f32 %v1178, %v1229
        %v1308 = vsub.f32 %v1179, %v1232
        %v1309 = vsub.f32 %v1180, %v1235
        %v1310 = vsub.f32 %v1181, %v1238
        %v1311 = vsub.f32 %v1182, %v1241
        %v1312 = vsub.f32 %v1183, %v1244
        %v1313 = vsub.f32 %v1184, %v1247
        %v1314 = vsub.f32 %v1185, %v1250
        %v1315 = vsub.f32 %v1186, %v1253
        %v1316 = vsub.f32 %v1187, %v1256
        %v1317 = vsub.f32 %v1188, %v1259
        %v1318 = vsub.f32 %v1189, %v1262
        %v1319 = vsub.f32 %v1190, %v1265
        %v1320 = vsub.f32 %v1191, %v1268
        %v1321 = vsub.f32 %v1192, %v1271
        %v1322 = vsub.f32 %v1193, %v1274
        %v1323 = vsub.f32 %v1194, %v1277
        %v1324 = vsub.f32 %v1195, %v1280
        %v1325 = vsub.f32 %v1196, %v1283
        %v1326 = vsub.f32 %v1197, %v1286
        %v1327 = vsub.f32 %v1198, %v1289
        %v1328 = vsub.f32 %v1199, %v1292
        %v1329 = vsub.f32 %v1200, %v1295
        %v1330 = vsub.f32 %v1201, %v1298
        %v1331 = vmul.f32 %v1299, 1.442695
        %v1332 = vpow.pop %v1331
        %v1333 = vmul.f32 %v1300, 1.442695
        %v1334 = vpow.pop %v1333
        %v1335 = vmul.f32 %v1301, 1.442695
        %v1336 = vpow.pop %v1335
        %v1337 = vmul.f32 %v1302, 1.442695
        %v1338 = vpow.pop %v1337
        %v1339 = vmul.f32 %v1303, 1.442695
        %v1340 = vpow.pop %v1339
        %v1341 = vmul.f32 %v1304, 1.442695
        %v1342 = vpow.pop %v1341
        %v1343 = vmul.f32 %v1305, 1.442695
        %v1344 = vpow.pop %v1343
        %v1345 = vmul.f32 %v1306, 1.442695
        %v1346 = vpow.pop %v1345
        %v1347 = vmul.f32 %v1307, 1.442695
        %v1348 = vpow.pop %v1347
        %v1349 = vmul.f32 %v1308, 1.442695
        %v1350 = vpow.pop %v1349
        %v1351 = vmul.f32 %v1309, 1.442695
        %v1352 = vpow.pop %v1351
        %v1353 = vmul.f32 %v1310, 1.442695
        %v1354 = vpow.pop %v1353
        %v1355 = vmul.f32 %v1311, 1.442695
        %v1356 = vpow.pop %v1355
        %v1357 = vmul.f32 %v1312, 1.442695
        %v1358 = vpow.pop %v1357
        %v1359 = vmul.f32 %v1313, 1.442695
        %v1360 = vpow.pop %v1359
        %v1361 = vmul.f32 %v1314, 1.442695
        %v1362 = vpow.pop %v1361
        %v1363 = vmul.f32 %v1315, 1.442695
        %v1364 = vpow.pop %v1363
        %v1365 = vmul.f32 %v1316, 1.442695
        %v1366 = vpow.pop %v1365
        %v1367 = vmul.f32 %v1317, 1.442695
        %v1368 = vpow.pop %v1367
        %v1369 = vmul.f32 %v1318, 1.442695
        %v1370 = vpow.pop %v1369
        %v1371 = vmul.f32 %v1319, 1.442695
        %v1372 = vpow.pop %v1371
        %v1373 = vmul.f32 %v1320, 1.442695
        %v1374 = vpow.pop %v1373
        %v1375 = vmul.f32 %v1321, 1.442695
        %v1376 = vpow.pop %v1375
        %v1377 = vmul.f32 %v1322, 1.442695
        %v1378 = vpow.pop %v1377
        %v1379 = vmul.f32 %v1323, 1.442695
        %v1380 = vpow.pop %v1379
        %v1381 = vmul.f32 %v1324, 1.442695
        %v1382 = vpow.pop %v1381
        %v1383 = vmul.f32 %v1325, 1.442695
        %v1384 = vpow.pop %v1383
        %v1385 = vmul.f32 %v1326, 1.442695
        %v1386 = vpow.pop %v1385
        %v1387 = vmul.f32 %v1327, 1.442695
        %v1388 = vpow.pop %v1387
        %v1389 = vmul.f32 %v1328, 1.442695
        %v1390 = vpow.pop %v1389
        %v1391 = vmul.f32 %v1329, 1.442695
        %v1392 = vpow.pop %v1391
        %v1393 = vmul.f32 %v1330, 1.442695
        %v1394 = vpow.pop %v1393
        %v1395 = vsel %vm1202, %v1332, 0.0
        %1396 = vadd.xlane.f32.xlu0 %v1395
        %v1397 = vpop.xlane.xlu0 %1396
        %v1398 = vsel %vm1202, %v1334, 0.0
        %1399 = vadd.xlane.f32.xlu0 %v1398
        %v1400 = vpop.xlane.xlu0 %1399
        %v1401 = vsel %vm1202, %v1336, 0.0
        %1402 = vadd.xlane.f32.xlu0 %v1401
        %v1403 = vpop.xlane.xlu0 %1402
        %v1404 = vsel %vm1202, %v1338, 0.0
        %1405 = vadd.xlane.f32.xlu0 %v1404
        %v1406 = vpop.xlane.xlu0 %1405
        %v1407 = vsel %vm1202, %v1340, 0.0
        %1408 = vadd.xlane.f32.xlu0 %v1407
        %v1409 = vpop.xlane.xlu0 %1408
        %v1410 = vsel %vm1202, %v1342, 0.0
        %1411 = vadd.xlane.f32.xlu0 %v1410
        %v1412 = vpop.xlane.xlu0 %1411
        %v1413 = vsel %vm1202, %v1344, 0.0
        %1414 = vadd.xlane.f32.xlu0 %v1413
        %v1415 = vpop.xlane.xlu0 %1414
        %v1416 = vsel %vm1202, %v1346, 0.0
        %1417 = vadd.xlane.f32.xlu0 %v1416
        %v1418 = vpop.xlane.xlu0 %1417
        %v1419 = vsel %vm1202, %v1348, 0.0
        %1420 = vadd.xlane.f32.xlu0 %v1419
        %v1421 = vpop.xlane.xlu0 %1420
        %v1422 = vsel %vm1202, %v1350, 0.0
        %1423 = vadd.xlane.f32.xlu0 %v1422
        %v1424 = vpop.xlane.xlu0 %1423
        %v1425 = vsel %vm1202, %v1352, 0.0
        %1426 = vadd.xlane.f32.xlu0 %v1425
        %v1427 = vpop.xlane.xlu0 %1426
        %v1428 = vsel %vm1202, %v1354, 0.0
        %1429 = vadd.xlane.f32.xlu0 %v1428
        %v1430 = vpop.xlane.xlu0 %1429
        %v1431 = vsel %vm1202, %v1356, 0.0
        %1432 = vadd.xlane.f32.xlu0 %v1431
        %v1433 = vpop.xlane.xlu0 %1432
        %v1434 = vsel %vm1202, %v1358, 0.0
        %1435 = vadd.xlane.f32.xlu0 %v1434
        %v1436 = vpop.xlane.xlu0 %1435
        %v1437 = vsel %vm1202, %v1360, 0.0
        %1438 = vadd.xlane.f32.xlu0 %v1437
        %v1439 = vpop.xlane.xlu0 %1438
        %v1440 = vsel %vm1202, %v1362, 0.0
        %1441 = vadd.xlane.f32.xlu0 %v1440
        %v1442 = vpop.xlane.xlu0 %1441
        %v1443 = vsel %vm1202, %v1364, 0.0
        %1444 = vadd.xlane.f32.xlu0 %v1443
        %v1445 = vpop.xlane.xlu0 %1444
        %v1446 = vsel %vm1202, %v1366, 0.0
        %1447 = vadd.xlane.f32.xlu0 %v1446
        %v1448 = vpop.xlane.xlu0 %1447
        %v1449 = vsel %vm1202, %v1368, 0.0
        %1450 = vadd.xlane.f32.xlu0 %v1449
        %v1451 = vpop.xlane.xlu0 %1450
        %v1452 = vsel %vm1202, %v1370, 0.0
        %1453 = vadd.xlane.f32.xlu0 %v1452
        %v1454 = vpop.xlane.xlu0 %1453
        %v1455 = vsel %vm1202, %v1372, 0.0
        %1456 = vadd.xlane.f32.xlu0 %v1455
        %v1457 = vpop.xlane.xlu0 %1456
        %v1458 = vsel %vm1202, %v1374, 0.0
        %1459 = vadd.xlane.f32.xlu0 %v1458
        %v1460 = vpop.xlane.xlu0 %1459
        %v1461 = vsel %vm1202, %v1376, 0.0
        %1462 = vadd.xlane.f32.xlu0 %v1461
        %v1463 = vpop.xlane.xlu0 %1462
        %v1464 = vsel %vm1202, %v1378, 0.0
        %1465 = vadd.xlane.f32.xlu0 %v1464
        %v1466 = vpop.xlane.xlu0 %1465
        %v1467 = vsel %vm1202, %v1380, 0.0
        %1468 = vadd.xlane.f32.xlu0 %v1467
        %v1469 = vpop.xlane.xlu0 %1468
        %v1470 = vsel %vm1202, %v1382, 0.0
        %1471 = vadd.xlane.f32.xlu0 %v1470
        %v1472 = vpop.xlane.xlu0 %1471
        %v1473 = vsel %vm1202, %v1384, 0.0
        %1474 = vadd.xlane.f32.xlu0 %v1473
        %v1475 = vpop.xlane.xlu0 %1474
        %v1476 = vsel %vm1202, %v1386, 0.0
        %1477 = vadd.xlane.f32.xlu0 %v1476
        %v1478 = vpop.xlane.xlu0 %1477
        %v1479 = vsel %vm1202, %v1388, 0.0
        %1480 = vadd.xlane.f32.xlu0 %v1479
        %v1481 = vpop.xlane.xlu0 %1480
        %v1482 = vsel %vm1202, %v1390, 0.0
        %1483 = vadd.xlane.f32.xlu0 %v1482
        %v1484 = vpop.xlane.xlu0 %1483
        %v1485 = vsel %vm1202, %v1392, 0.0
        %1486 = vadd.xlane.f32.xlu0 %v1485
        %v1487 = vpop.xlane.xlu0 %1486
        %v1488 = vsel %vm1202, %v1394, 0.0
        %1489 = vadd.xlane.f32.xlu0 %v1488
        %v1490 = vpop.xlane.xlu0 %1489
        %v1491 = vrcp.pop %v1397
        %v1492 = vrcp.pop %v1400
        %v1493 = vrcp.pop %v1403
        %v1494 = vrcp.pop %v1406
        %v1495 = vrcp.pop %v1409
        %v1496 = vrcp.pop %v1412
        %v1497 = vrcp.pop %v1415
        %v1498 = vrcp.pop %v1418
        %v1499 = vrcp.pop %v1421
        %v1500 = vrcp.pop %v1424
        %v1501 = vrcp.pop %v1427
        %v1502 = vrcp.pop %v1430
        %v1503 = vrcp.pop %v1433
        %v1504 = vrcp.pop %v1436
        %v1505 = vrcp.pop %v1439
        %v1506 = vrcp.pop %v1442
        %v1507 = vrcp.pop %v1445
        %v1508 = vrcp.pop %v1448
        %v1509 = vrcp.pop %v1451
        %v1510 = vrcp.pop %v1454
        %v1511 = vrcp.pop %v1457
        %v1512 = vrcp.pop %v1460
        %v1513 = vrcp.pop %v1463
        %v1514 = vrcp.pop %v1466
        %v1515 = vrcp.pop %v1469
        %v1516 = vrcp.pop %v1472
        %v1517 = vrcp.pop %v1475
        %v1518 = vrcp.pop %v1478
        %v1519 = vrcp.pop %v1481
        %v1520 = vrcp.pop %v1484
        %v1521 = vrcp.pop %v1487
        %v1522 = vrcp.pop %v1490
        %v1523 = vmul.f32 %v1332, %v1491
        %v1524 = vmul.f32 %v1334, %v1492
        %v1525 = vmul.f32 %v1336, %v1493
        %v1526 = vmul.f32 %v1338, %v1494
        %v1527 = vmul.f32 %v1340, %v1495
        %v1528 = vmul.f32 %v1342, %v1496
        %v1529 = vmul.f32 %v1344, %v1497
        %v1530 = vmul.f32 %v1346, %v1498
        %v1531 = vmul.f32 %v1348, %v1499
        %v1532 = vmul.f32 %v1350, %v1500
        %v1533 = vmul.f32 %v1352, %v1501
        %v1534 = vmul.f32 %v1354, %v1502
        %v1535 = vmul.f32 %v1356, %v1503
        %v1536 = vmul.f32 %v1358, %v1504
        %v1537 = vmul.f32 %v1360, %v1505
        %v1538 = vmul.f32 %v1362, %v1506
        %v1539 = vmul.f32 %v1364, %v1507
        %v1540 = vmul.f32 %v1366, %v1508
        %v1541 = vmul.f32 %v1368, %v1509
        %v1542 = vmul.f32 %v1370, %v1510
        %v1543 = vmul.f32 %v1372, %v1511
        %v1544 = vmul.f32 %v1374, %v1512
        %v1545 = vmul.f32 %v1376, %v1513
        %v1546 = vmul.f32 %v1378, %v1514
        %v1547 = vmul.f32 %v1380, %v1515
        %v1548 = vmul.f32 %v1382, %v1516
        %v1549 = vmul.f32 %v1384, %v1517
        %v1550 = vmul.f32 %v1386, %v1518
        %v1551 = vmul.f32 %v1388, %v1519
        %v1552 = vmul.f32 %v1390, %v1520
        %v1553 = vmul.f32 %v1392, %v1521
        %v1554 = vmul.f32 %v1394, %v1522
        %1555 = vrot.lane.b32.xlu0 %v332, 64
        %v1556 = vpop.permute.xlu0 %1555
        %1557 = vrot.lane.b32.xlu0 %v337, 64
        %v1558 = vpop.permute.xlu0 %1557
        %1559 = vrot.lane.b32.xlu0 %v342, 64
        %v1560 = vpop.permute.xlu0 %1559
        %1561 = vrot.lane.b32.xlu0 %v347, 64
        %v1562 = vpop.permute.xlu0 %1561
        %1563 = vrot.lane.b32.xlu0 %v352, 64
        %v1564 = vpop.permute.xlu0 %1563
        %1565 = vrot.lane.b32.xlu0 %v357, 64
        %v1566 = vpop.permute.xlu0 %1565
        %1567 = vrot.lane.b32.xlu0 %v362, 64
        %v1568 = vpop.permute.xlu0 %1567
        %1569 = vrot.lane.b32.xlu0 %v367, 64
        %v1570 = vpop.permute.xlu0 %1569
        %v1580 = vsel %vm1202, %v1523, 0
        %v1583 = vsel %vm1202, %v1524, 0
        %v1586 = vsel %vm1202, %v1525, 0
        %v1589 = vsel %vm1202, %v1526, 0
        %v1592 = vsel %vm1202, %v1527, 0
        %v1595 = vsel %vm1202, %v1528, 0
        %v1598 = vsel %vm1202, %v1529, 0
        %v1601 = vsel %vm1202, %v1530, 0
        %1603 = vmatprep.subr.mxu0 0.0
        %1604 = vmatpush1.msra.mxu0 %v1556
        %1605 = vmatprep.subr.mxu0 0.0
        %1606 = vmatpush1.msra.mxu0 %v1558
        %1607 = vmatprep.subr.mxu0 0.0
        %1608 = vmatpush1.msra.mxu0 %v1560
        %1609 = vmatprep.subr.mxu0 0.0
        %1610 = vmatpush1.msra.mxu0 %v1562
        %1611 = vmatprep.subr.mxu0 0.0
        %1612 = vmatpush1.msra.mxu0 %v1564
        %1613 = vmatprep.subr.mxu0 0.0
        %1614 = vmatpush1.msra.mxu0 %v1566
        %1615 = vmatprep.subr.mxu0 0.0
        %1616 = vmatpush1.msra.mxu0 %v1568
        %1617 = vmatprep.subr.mxu0 0.0
        %1618 = vmatpush1.msra.mxu0 %v1570
        %1619 = vmatprep.subr.mxu0 0.0
        %1620 = vmatpush1.msra.mxu0 0.0
        %1621 = vmatprep.subr.mxu0 0.0
        %1622 = vmatpush1.msra.mxu0 0.0
        %1623 = vmatprep.subr.mxu0 0.0
        %1624 = vmatpush1.msra.mxu0 0.0
        %1625 = vmatprep.subr.mxu0 0.0
        %1626 = vmatpush1.msra.mxu0 0.0
        %1627 = vmatprep.subr.mxu0 0.0
        %1628 = vmatpush1.msra.mxu0 0.0
        %1629 = vmatprep.subr.mxu0 0.0
        %1630 = vmatpush1.msra.mxu0 0.0
        %1631 = vmatprep.subr.mxu0 0.0
        %1632 = vmatpush1.msra.mxu0 0.0
        %1633 = vmatprep.subr.mxu0 0.0
        %1634 = vmatpush1.msra.mxu0 0.0
        %1635 = vmatprep.subr.mxu0 0.0
        %1636 = vmatpush1.msra.mxu0 0.0
        %1637 = vmatprep.subr.mxu0 0.0
        %1638 = vmatpush1.msra.mxu0 0.0
        %1639 = vmatprep.subr.mxu0 0.0
        %1640 = vmatpush1.msra.mxu0 0.0
        %1641 = vmatprep.subr.mxu0 0.0
        %1642 = vmatpush1.msra.mxu0 0.0
        %1643 = vmatprep.subr.mxu0 0.0
        %1644 = vmatpush1.msra.mxu0 0.0
        %1645 = vmatprep.subr.mxu0 0.0
        %1646 = vmatpush1.msra.mxu0 0.0
        %1647 = vmatprep.subr.mxu0 0.0
        %1648 = vmatpush1.msra.mxu0 0.0
        %1649 = vmatprep.subr.mxu0 0.0
        %1650 = vmatpush1.msra.mxu0 0.0
        %1651 = vmatprep.subr.mxu0 0.0
        %1652 = vmatpush1.msra.mxu0 0.0
        %1653 = vmatprep.subr.mxu0 0.0
        %1654 = vmatpush1.msra.mxu0 0.0
        %1655 = vmatprep.subr.mxu0 0.0
        %1656 = vmatpush1.msra.mxu0 0.0
        %1657 = vmatprep.subr.mxu0 0.0
        %1658 = vmatpush1.msra.mxu0 0.0
        %1659 = vmatprep.subr.mxu0 0.0
        %1660 = vmatpush1.msra.mxu0 0.0
        %1661 = vmatprep.subr.mxu0 0.0
        %1662 = vmatpush1.msra.mxu0 0.0
        %1663 = vmatprep.subr.mxu0 0.0
        %1664 = vmatpush1.msra.mxu0 0.0
        %1665 = vmatprep.subr.mxu0 0.0
        %1666 = vmatpush1.msra.mxu0 0.0
        %1667 = vmatprep.mubr.f32.mxu0 0.0
        %1668 = vmatmul.mubr.f32.gmra.mrb[0].mxu0 %v1580
        %v1669 = vpop.f32.mrb[0].mxu0
        %v1670 = vadd.f32 0.0, %v1669
        %v1671 = vpop.f32.mrb[0].mxu0
        %1672 = vmatprep.mubr.f32.mxu0 0.0
        %1673 = vmatmul.mubr.f32.gmra.mrb[0].mxu0 %v1583
        %v1674 = vpop.f32.mrb[0].mxu0
        %v1675 = vadd.f32 0.0, %v1674
        %v1676 = vpop.f32.mrb[0].mxu0
        %1677 = vmatprep.mubr.f32.mxu0 0.0
        %1678 = vmatmul.mubr.f32.gmra.mrb[0].mxu0 %v1586
        %v1679 = vpop.f32.mrb[0].mxu0
        %v1680 = vadd.f32 0.0, %v1679
        %v1681 = vpop.f32.mrb[0].mxu0
        %1682 = vmatprep.mubr.f32.mxu0 0.0
        %1683 = vmatmul.mubr.f32.gmra.mrb[0].mxu0 %v1589
        %v1684 = vpop.f32.mrb[0].mxu0
        %v1685 = vadd.f32 0.0, %v1684
        %v1686 = vpop.f32.mrb[0].mxu0
        %1687 = vmatprep.mubr.f32.mxu0 0.0
        %1688 = vmatmul.mubr.f32.gmra.mrb[0].mxu0 %v1592
        %v1689 = vpop.f32.mrb[0].mxu0
        %v1690 = vadd.f32 0.0, %v1689
        %v1691 = vpop.f32.mrb[0].mxu0
        %1692 = vmatprep.mubr.f32.mxu0 0.0
        %1693 = vmatmul.mubr.f32.gmra.mrb[0].mxu0 %v1595
        %v1694 = vpop.f32.mrb[0].mxu0
        %v1695 = vadd.f32 0.0, %v1694
        %v1696 = vpop.f32.mrb[0].mxu0
        %1697 = vmatprep.mubr.f32.mxu0 0.0
        %1698 = vmatmul.mubr.f32.gmra.mrb[0].mxu0 %v1598
        %v1699 = vpop.f32.mrb[0].mxu0
        %v1700 = vadd.f32 0.0, %v1699
        %v1701 = vpop.f32.mrb[0].mxu0
        %1702 = vmatprep.mubr.f32.mxu0 0.0
        %1703 = vmatmul.mubr.f32.gmra.mrb[0].mxu0 %v1601
        %v1704 = vpop.f32.mrb[0].mxu0
        %v1705 = vadd.f32 0.0, %v1704
        %v1706 = vpop.f32.mrb[0].mxu0
        %1707 = vdwg.mxu0
        %1708 = vrot.lane.b32.xlu0 %v372, 64
        %v1709 = vpop.permute.xlu0 %1708
        %1710 = vrot.lane.b32.xlu0 %v377, 64
        %v1711 = vpop.permute.xlu0 %1710
        %1712 = vrot.lane.b32.xlu0 %v382, 64
        %v1713 = vpop.permute.xlu0 %1712
        %1714 = vrot.lane.b32.xlu0 %v387, 64
        %v1715 = vpop.permute.xlu0 %1714
        %1716 = vrot.lane.b32.xlu0 %v392, 64
        %v1717 = vpop.permute.xlu0 %1716
        %1718 = vrot.lane.b32.xlu0 %v397, 64
        %v1719 = vpop.permute.xlu0 %1718
        %1720 = vrot.lane.b32.xlu0 %v402, 64
        %v1721 = vpop.permute.xlu0 %1720
        %1722 = vrot.lane.b32.xlu0 %v407, 64
        %v1723 = vpop.permute.xlu0 %1722
        %v1733 = vsel %vm1202, %v1531, 0
        %v1736 = vsel %vm1202, %v1532, 0
        %v1739 = vsel %vm1202, %v1533, 0
        %v1742 = vsel %vm1202, %v1534, 0
        %v1745 = vsel %vm1202, %v1535, 0
        %v1748 = vsel %vm1202, %v1536, 0
        %v1751 = vsel %vm1202, %v1537, 0
        %v1754 = vsel %vm1202, %v1538, 0
        %1756 = vmatprep.subr.mxu0 0.0
        %1757 = vmatpush1.msra.mxu0 %v1709
        %1758 = vmatprep.subr.mxu0 0.0
        %1759 = vmatpush1.msra.mxu0 %v1711
        %1760 = vmatprep.subr.mxu0 0.0
        %1761 = vmatpush1.msra.mxu0 %v1713
        %1762 = vmatprep.subr.mxu0 0.0
        %1763 = vmatpush1.msra.mxu0 %v1715
        %1764 = vmatprep.subr.mxu0 0.0
        %1765 = vmatpush1.msra.mxu0 %v1717
        %1766 = vmatprep.subr.mxu0 0.0
        %1767 = vmatpush1.msra.mxu0 %v1719
        %1768 = vmatprep.subr.mxu0 0.0
        %1769 = vmatpush1.msra.mxu0 %v1721
        %1770 = vmatprep.subr.mxu0 0.0
        %1771 = vmatpush1.msra.mxu0 %v1723
        %1772 = vmatprep.subr.mxu0 0.0
        %1773 = vmatpush1.msra.mxu0 0.0
        %1774 = vmatprep.subr.mxu0 0.0
        %1775 = vmatpush1.msra.mxu0 0.0
        %1776 = vmatprep.subr.mxu0 0.0
        %1777 = vmatpush1.msra.mxu0 0.0
        %1778 = vmatprep.subr.mxu0 0.0
        %1779 = vmatpush1.msra.mxu0 0.0
        %1780 = vmatprep.subr.mxu0 0.0
        %1781 = vmatpush1.msra.mxu0 0.0
        %1782 = vmatprep.subr.mxu0 0.0
        %1783 = vmatpush1.msra.mxu0 0.0
        %1784 = vmatprep.subr.mxu0 0.0
        %1785 = vmatpush1.msra.mxu0 0.0
        %1786 = vmatprep.subr.mxu0 0.0
        %1787 = vmatpush1.msra.mxu0 0.0
        %1788 = vmatprep.subr.mxu0 0.0
        %1789 = vmatpush1.msra.mxu0 0.0
        %1790 = vmatprep.subr.mxu0 0.0
        %1791 = vmatpush1.msra.mxu0 0.0
        %1792 = vmatprep.subr.mxu0 0.0
        %1793 = vmatpush1.msra.mxu0 0.0
        %1794 = vmatprep.subr.mxu0 0.0
        %1795 = vmatpush1.msra.mxu0 0.0
        %1796 = vmatprep.subr.mxu0 0.0
        %1797 = vmatpush1.msra.mxu0 0.0
        %1798 = vmatprep.subr.mxu0 0.0
        %1799 = vmatpush1.msra.mxu0 0.0
        %1800 = vmatprep.subr.mxu0 0.0
        %1801 = vmatpush1.msra.mxu0 0.0
        %1802 = vmatprep.subr.mxu0 0.0
        %1803 = vmatpush1.msra.mxu0 0.0
        %1804 = vmatprep.subr.mxu0 0.0
        %1805 = vmatpush1.msra.mxu0 0.0
        %1806 = vmatprep.subr.mxu0 0.0
        %1807 = vmatpush1.msra.mxu0 0.0
        %1808 = vmatprep.subr.mxu0 0.0
        %1809 = vmatpush1.msra.mxu0 0.0
        %1810 = vmatprep.subr.mxu0 0.0
        %1811 = vmatpush1.msra.mxu0 0.0
        %1812 = vmatprep.subr.mxu0 0.0
        %1813 = vmatpush1.msra.mxu0 0.0
        %1814 = vmatprep.subr.mxu0 0.0
        %1815 = vmatpush1.msra.mxu0 0.0
        %1816 = vmatprep.subr.mxu0 0.0
        %1817 = vmatpush1.msra.mxu0 0.0
        %1818 = vmatprep.subr.mxu0 0.0
        %1819 = vmatpush1.msra.mxu0 0.0
        %1820 = vmatprep.mubr.f32.mxu0 0.0
        %1821 = vmatmul.mubr.f32.gmra.mrb[0].mxu0 %v1733
        %v1822 = vpop.f32.mrb[0].mxu0
        %v1823 = vadd.f32 0.0, %v1822
        %v1824 = vpop.f32.mrb[0].mxu0
        %1825 = vmatprep.mubr.f32.mxu0 0.0
        %1826 = vmatmul.mubr.f32.gmra.mrb[0].mxu0 %v1736
        %v1827 = vpop.f32.mrb[0].mxu0
        %v1828 = vadd.f32 0.0, %v1827
        %v1829 = vpop.f32.mrb[0].mxu0
        %1830 = vmatprep.mubr.f32.mxu0 0.0
        %1831 = vmatmul.mubr.f32.gmra.mrb[0].mxu0 %v1739
        %v1832 = vpop.f32.mrb[0].mxu0
        %v1833 = vadd.f32 0.0, %v1832
        %v1834 = vpop.f32.mrb[0].mxu0
        %1835 = vmatprep.mubr.f32.mxu0 0.0
        %1836 = vmatmul.mubr.f32.gmra.mrb[0].mxu0 %v1742
        %v1837 = vpop.f32.mrb[0].mxu0
        %v1838 = vadd.f32 0.0, %v1837
        %v1839 = vpop.f32.mrb[0].mxu0
        %1840 = vmatprep.mubr.f32.mxu0 0.0
        %1841 = vmatmul.mubr.f32.gmra.mrb[0].mxu0 %v1745
        %v1842 = vpop.f32.mrb[0].mxu0
        %v1843 = vadd.f32 0.0, %v1842
        %v1844 = vpop.f32.mrb[0].mxu0
        %1845 = vmatprep.mubr.f32.mxu0 0.0
        %1846 = vmatmul.mubr.f32.gmra.mrb[0].mxu0 %v1748
        %v1847 = vpop.f32.mrb[0].mxu0
        %v1848 = vadd.f32 0.0, %v1847
        %v1849 = vpop.f32.mrb[0].mxu0
        %1850 = vmatprep.mubr.f32.mxu0 0.0
        %1851 = vmatmul.mubr.f32.gmra.mrb[0].mxu0 %v1751
        %v1852 = vpop.f32.mrb[0].mxu0
        %v1853 = vadd.f32 0.0, %v1852
        %v1854 = vpop.f32.mrb[0].mxu0
        %1855 = vmatprep.mubr.f32.mxu0 0.0
        %1856 = vmatmul.mubr.f32.gmra.mrb[0].mxu0 %v1754
        %v1857 = vpop.f32.mrb[0].mxu0
        %v1858 = vadd.f32 0.0, %v1857
        %v1859 = vpop.f32.mrb[0].mxu0
        %1860 = vdwg.mxu0
        %1861 = vrot.lane.b32.xlu0 %v412, 64
        %v1862 = vpop.permute.xlu0 %1861
        %1863 = vrot.lane.b32.xlu0 %v417, 64
        %v1864 = vpop.permute.xlu0 %1863
        %1865 = vrot.lane.b32.xlu0 %v422, 64
        %v1866 = vpop.permute.xlu0 %1865
        %1867 = vrot.lane.b32.xlu0 %v427, 64
        %v1868 = vpop.permute.xlu0 %1867
        %1869 = vrot.lane.b32.xlu0 %v432, 64
        %v1870 = vpop.permute.xlu0 %1869
        %1871 = vrot.lane.b32.xlu0 %v437, 64
        %v1872 = vpop.permute.xlu0 %1871
        %1873 = vrot.lane.b32.xlu0 %v442, 64
        %v1874 = vpop.permute.xlu0 %1873
        %1875 = vrot.lane.b32.xlu0 %v447, 64
        %v1876 = vpop.permute.xlu0 %1875
        %v1886 = vsel %vm1202, %v1539, 0
        %v1889 = vsel %vm1202, %v1540, 0
        %v1892 = vsel %vm1202, %v1541, 0
        %v1895 = vsel %vm1202, %v1542, 0
        %v1898 = vsel %vm1202, %v1543, 0
        %v1901 = vsel %vm1202, %v1544, 0
        %v1904 = vsel %vm1202, %v1545, 0
        %v1907 = vsel %vm1202, %v1546, 0
        %1909 = vmatprep.subr.mxu0 0.0
        %1910 = vmatpush1.msra.mxu0 %v1862
        %1911 = vmatprep.subr.mxu0 0.0
        %1912 = vmatpush1.msra.mxu0 %v1864
        %1913 = vmatprep.subr.mxu0 0.0
        %1914 = vmatpush1.msra.mxu0 %v1866
        %1915 = vmatprep.subr.mxu0 0.0
        %1916 = vmatpush1.msra.mxu0 %v1868
        %1917 = vmatprep.subr.mxu0 0.0
        %1918 = vmatpush1.msra.mxu0 %v1870
        %1919 = vmatprep.subr.mxu0 0.0
        %1920 = vmatpush1.msra.mxu0 %v1872
        %1921 = vmatprep.subr.mxu0 0.0
        %1922 = vmatpush1.msra.mxu0 %v1874
        %1923 = vmatprep.subr.mxu0 0.0
        %1924 = vmatpush1.msra.mxu0 %v1876
        %1925 = vmatprep.subr.mxu0 0.0
        %1926 = vmatpush1.msra.mxu0 0.0
        %1927 = vmatprep.subr.mxu0 0.0
        %1928 = vmatpush1.msra.mxu0 0.0
        %1929 = vmatprep.subr.mxu0 0.0
        %1930 = vmatpush1.msra.mxu0 0.0
        %1931 = vmatprep.subr.mxu0 0.0
        %1932 = vmatpush1.msra.mxu0 0.0
        %1933 = vmatprep.subr.mxu0 0.0
        %1934 = vmatpush1.msra.mxu0 0.0
        %1935 = vmatprep.subr.mxu0 0.0
        %1936 = vmatpush1.msra.mxu0 0.0
        %1937 = vmatprep.subr.mxu0 0.0
        %1938 = vmatpush1.msra.mxu0 0.0
        %1939 = vmatprep.subr.mxu0 0.0
        %1940 = vmatpush1.msra.mxu0 0.0
        %1941 = vmatprep.subr.mxu0 0.0
        %1942 = vmatpush1.msra.mxu0 0.0
        %1943 = vmatprep.subr.mxu0 0.0
        %1944 = vmatpush1.msra.mxu0 0.0
        %1945 = vmatprep.subr.mxu0 0.0
        %1946 = vmatpush1.msra.mxu0 0.0
        %1947 = vmatprep.subr.mxu0 0.0
        %1948 = vmatpush1.msra.mxu0 0.0
        %1949 = vmatprep.subr.mxu0 0.0
        %1950 = vmatpush1.msra.mxu0 0.0
        %1951 = vmatprep.subr.mxu0 0.0
        %1952 = vmatpush1.msra.mxu0 0.0
        %1953 = vmatprep.subr.mxu0 0.0
        %1954 = vmatpush1.msra.mxu0 0.0
        %1955 = vmatprep.subr.mxu0 0.0
        %1956 = vmatpush1.msra.mxu0 0.0
        %1957 = vmatprep.subr.mxu0 0.0
        %1958 = vmatpush1.msra.mxu0 0.0
        %1959 = vmatprep.subr.mxu0 0.0
        %1960 = vmatpush1.msra.mxu0 0.0
        %1961 = vmatprep.subr.mxu0 0.0
        %1962 = vmatpush1.msra.mxu0 0.0
        %1963 = vmatprep.subr.mxu0 0.0
        %1964 = vmatpush1.msra.mxu0 0.0
        %1965 = vmatprep.subr.mxu0 0.0
        %1966 = vmatpush1.msra.mxu0 0.0
        %1967 = vmatprep.subr.mxu0 0.0
        %1968 = vmatpush1.msra.mxu0 0.0
        %1969 = vmatprep.subr.mxu0 0.0
        %1970 = vmatpush1.msra.mxu0 0.0
        %1971 = vmatprep.subr.mxu0 0.0
        %1972 = vmatpush1.msra.mxu0 0.0
        %1973 = vmatprep.mubr.f32.mxu0 0.0
        %1974 = vmatmul.mubr.f32.gmra.mrb[0].mxu0 %v1886
        %v1975 = vpop.f32.mrb[0].mxu0
        %v1976 = vadd.f32 0.0, %v1975
        %v1977 = vpop.f32.mrb[0].mxu0
        %1978 = vmatprep.mubr.f32.mxu0 0.0
        %1979 = vmatmul.mubr.f32.gmra.mrb[0].mxu0 %v1889
        %v1980 = vpop.f32.mrb[0].mxu0
        %v1981 = vadd.f32 0.0, %v1980
        %v1982 = vpop.f32.mrb[0].mxu0
        %1983 = vmatprep.mubr.f32.mxu0 0.0
        %1984 = vmatmul.mubr.f32.gmra.mrb[0].mxu0 %v1892
        %v1985 = vpop.f32.mrb[0].mxu0
        %v1986 = vadd.f32 0.0, %v1985
        %v1987 = vpop.f32.mrb[0].mxu0
        %1988 = vmatprep.mubr.f32.mxu0 0.0
        %1989 = vmatmul.mubr.f32.gmra.mrb[0].mxu0 %v1895
        %v1990 = vpop.f32.mrb[0].mxu0
        %v1991 = vadd.f32 0.0, %v1990
        %v1992 = vpop.f32.mrb[0].mxu0
        %1993 = vmatprep.mubr.f32.mxu0 0.0
        %1994 = vmatmul.mubr.f32.gmra.mrb[0].mxu0 %v1898
        %v1995 = vpop.f32.mrb[0].mxu0
        %v1996 = vadd.f32 0.0, %v1995
        %v1997 = vpop.f32.mrb[0].mxu0
        %1998 = vmatprep.mubr.f32.mxu0 0.0
        %1999 = vmatmul.mubr.f32.gmra.mrb[0].mxu0 %v1901
        %v2000 = vpop.f32.mrb[0].mxu0
        %v2001 = vadd.f32 0.0, %v2000
        %v2002 = vpop.f32.mrb[0].mxu0
        %2003 = vmatprep.mubr.f32.mxu0 0.0
        %2004 = vmatmul.mubr.f32.gmra.mrb[0].mxu0 %v1904
        %v2005 = vpop.f32.mrb[0].mxu0
        %v2006 = vadd.f32 0.0, %v2005
        %v2007 = vpop.f32.mrb[0].mxu0
        %2008 = vmatprep.mubr.f32.mxu0 0.0
        %2009 = vmatmul.mubr.f32.gmra.mrb[0].mxu0 %v1907
        %v2010 = vpop.f32.mrb[0].mxu0
        %v2011 = vadd.f32 0.0, %v2010
        %v2012 = vpop.f32.mrb[0].mxu0
        %2013 = vdwg.mxu0
        %2014 = vrot.lane.b32.xlu0 %v452, 64
        %v2015 = vpop.permute.xlu0 %2014
        %2016 = vrot.lane.b32.xlu0 %v457, 64
        %v2017 = vpop.permute.xlu0 %2016
        %2018 = vrot.lane.b32.xlu0 %v462, 64
        %v2019 = vpop.permute.xlu0 %2018
        %2020 = vrot.lane.b32.xlu0 %v467, 64
        %v2021 = vpop.permute.xlu0 %2020
        %2022 = vrot.lane.b32.xlu0 %v472, 64
        %v2023 = vpop.permute.xlu0 %2022
        %2024 = vrot.lane.b32.xlu0 %v477, 64
        %v2025 = vpop.permute.xlu0 %2024
        %2026 = vrot.lane.b32.xlu0 %v482, 64
        %v2027 = vpop.permute.xlu0 %2026
        %2028 = vrot.lane.b32.xlu0 %v487, 64
        %v2029 = vpop.permute.xlu0 %2028
        %v2039 = vsel %vm1202, %v1547, 0
        %v2042 = vsel %vm1202, %v1548, 0
        %v2045 = vsel %vm1202, %v1549, 0
        %v2048 = vsel %vm1202, %v1550, 0
        %v2051 = vsel %vm1202, %v1551, 0
        %v2054 = vsel %vm1202, %v1552, 0
        %v2057 = vsel %vm1202, %v1553, 0
        %v2060 = vsel %vm1202, %v1554, 0
        %2062 = vmatprep.subr.mxu0 0.0
        %2063 = vmatpush1.msra.mxu0 %v2015
        %2064 = vmatprep.subr.mxu0 0.0
        %2065 = vmatpush1.msra.mxu0 %v2017
        %2066 = vmatprep.subr.mxu0 0.0
        %2067 = vmatpush1.msra.mxu0 %v2019
        %2068 = vmatprep.subr.mxu0 0.0
        %2069 = vmatpush1.msra.mxu0 %v2021
        %2070 = vmatprep.subr.mxu0 0.0
        %2071 = vmatpush1.msra.mxu0 %v2023
        %2072 = vmatprep.subr.mxu0 0.0
        %2073 = vmatpush1.msra.mxu0 %v2025
        %2074 = vmatprep.subr.mxu0 0.0
        %2075 = vmatpush1.msra.mxu0 %v2027
        %2076 = vmatprep.subr.mxu0 0.0
        %2077 = vmatpush1.msra.mxu0 %v2029
        %2078 = vmatprep.subr.mxu0 0.0
        %2079 = vmatpush1.msra.mxu0 0.0
        %2080 = vmatprep.subr.mxu0 0.0
        %2081 = vmatpush1.msra.mxu0 0.0
        %2082 = vmatprep.subr.mxu0 0.0
        %2083 = vmatpush1.msra.mxu0 0.0
        %2084 = vmatprep.subr.mxu0 0.0
        %2085 = vmatpush1.msra.mxu0 0.0
        %2086 = vmatprep.subr.mxu0 0.0
        %2087 = vmatpush1.msra.mxu0 0.0
        %2088 = vmatprep.subr.mxu0 0.0
        %2089 = vmatpush1.msra.mxu0 0.0
        %2090 = vmatprep.subr.mxu0 0.0
        %2091 = vmatpush1.msra.mxu0 0.0
        %2092 = vmatprep.subr.mxu0 0.0
        %2093 = vmatpush1.msra.mxu0 0.0
        %2094 = vmatprep.subr.mxu0 0.0
        %2095 = vmatpush1.msra.mxu0 0.0
        %2096 = vmatprep.subr.mxu0 0.0
        %2097 = vmatpush1.msra.mxu0 0.0
        %2098 = vmatprep.subr.mxu0 0.0
        %2099 = vmatpush1.msra.mxu0 0.0
        %2100 = vmatprep.subr.mxu0 0.0
        %2101 = vmatpush1.msra.mxu0 0.0
        %2102 = vmatprep.subr.mxu0 0.0
        %2103 = vmatpush1.msra.mxu0 0.0
        %2104 = vmatprep.subr.mxu0 0.0
        %2105 = vmatpush1.msra.mxu0 0.0
        %2106 = vmatprep.subr.mxu0 0.0
        %2107 = vmatpush1.msra.mxu0 0.0
        %2108 = vmatprep.subr.mxu0 0.0
        %2109 = vmatpush1.msra.mxu0 0.0
        %2110 = vmatprep.subr.mxu0 0.0
        %2111 = vmatpush1.msra.mxu0 0.0
        %2112 = vmatprep.subr.mxu0 0.0
        %2113 = vmatpush1.msra.mxu0 0.0
        %2114 = vmatprep.subr.mxu0 0.0
        %2115 = vmatpush1.msra.mxu0 0.0
        %2116 = vmatprep.subr.mxu0 0.0
        %2117 = vmatpush1.msra.mxu0 0.0
        %2118 = vmatprep.subr.mxu0 0.0
        %2119 = vmatpush1.msra.mxu0 0.0
        %2120 = vmatprep.subr.mxu0 0.0
        %2121 = vmatpush1.msra.mxu0 0.0
        %2122 = vmatprep.subr.mxu0 0.0
        %2123 = vmatpush1.msra.mxu0 0.0
        %2124 = vmatprep.subr.mxu0 0.0
        %2125 = vmatpush1.msra.mxu0 0.0
        %2126 = vmatprep.mubr.f32.mxu0 0.0
        %2127 = vmatmul.mubr.f32.gmra.mrb[0].mxu0 %v2039
        %v2128 = vpop.f32.mrb[0].mxu0
        %v2129 = vadd.f32 0.0, %v2128
        %v2130 = vpop.f32.mrb[0].mxu0
        %2131 = vmatprep.mubr.f32.mxu0 0.0
        %2132 = vmatmul.mubr.f32.gmra.mrb[0].mxu0 %v2042
        %v2133 = vpop.f32.mrb[0].mxu0
        %v2134 = vadd.f32 0.0, %v2133
        %v2135 = vpop.f32.mrb[0].mxu0
        %2136 = vmatprep.mubr.f32.mxu0 0.0
        %2137 = vmatmul.mubr.f32.gmra.mrb[0].mxu0 %v2045
        %v2138 = vpop.f32.mrb[0].mxu0
        %v2139 = vadd.f32 0.0, %v2138
        %v2140 = vpop.f32.mrb[0].mxu0
        %2141 = vmatprep.mubr.f32.mxu0 0.0
        %2142 = vmatmul.mubr.f32.gmra.mrb[0].mxu0 %v2048
        %v2143 = vpop.f32.mrb[0].mxu0
        %v2144 = vadd.f32 0.0, %v2143
        %v2145 = vpop.f32.mrb[0].mxu0
        %2146 = vmatprep.mubr.f32.mxu0 0.0
        %2147 = vmatmul.mubr.f32.gmra.mrb[0].mxu0 %v2051
        %v2148 = vpop.f32.mrb[0].mxu0
        %v2149 = vadd.f32 0.0, %v2148
        %v2150 = vpop.f32.mrb[0].mxu0
        %2151 = vmatprep.mubr.f32.mxu0 0.0
        %2152 = vmatmul.mubr.f32.gmra.mrb[0].mxu0 %v2054
        %v2153 = vpop.f32.mrb[0].mxu0
        %v2154 = vadd.f32 0.0, %v2153
        %v2155 = vpop.f32.mrb[0].mxu0
        %2156 = vmatprep.mubr.f32.mxu0 0.0
        %2157 = vmatmul.mubr.f32.gmra.mrb[0].mxu0 %v2057
        %v2158 = vpop.f32.mrb[0].mxu0
        %v2159 = vadd.f32 0.0, %v2158
        %v2160 = vpop.f32.mrb[0].mxu0
        %2161 = vmatprep.mubr.f32.mxu0 0.0
        %2162 = vmatmul.mubr.f32.gmra.mrb[0].mxu0 %v2060
        %v2163 = vpop.f32.mrb[0].mxu0
        %v2164 = vadd.f32 0.0, %v2163
        %v2165 = vpop.f32.mrb[0].mxu0
        %2166 = vdwg.mxu0
        %2167 = vst.msk [vmem:[%s167] sm:$0xff] %vm514, %v1670
        %2168 = vst.msk [vmem:[%s167 + $0x8] sm:$0xff] %vm514, %v1675
        %2169 = vst.msk [vmem:[%s167 + $0x10] sm:$0xff] %vm514, %v1680
        %2170 = vst.msk [vmem:[%s167 + $0x18] sm:$0xff] %vm514, %v1685
        %2171 = vst.msk [vmem:[%s167 + $0x20] sm:$0xff] %vm514, %v1690
        %2172 = vst.msk [vmem:[%s167 + $0x28] sm:$0xff] %vm514, %v1695
        %2173 = vst.msk [vmem:[%s167 + $0x30] sm:$0xff] %vm514, %v1700
        %2174 = vst.msk [vmem:[%s167 + $0x38] sm:$0xff] %vm514, %v1705
        %2175 = vst.msk [vmem:[%s167 + $0x40] sm:$0xff] %vm514, %v1823
        %2176 = vst.msk [vmem:[%s167 + $0x48] sm:$0xff] %vm514, %v1828
        %2177 = vst.msk [vmem:[%s167 + $0x50] sm:$0xff] %vm514, %v1833
        %2178 = vst.msk [vmem:[%s167 + $0x58] sm:$0xff] %vm514, %v1838
        %2179 = vst.msk [vmem:[%s167 + $0x60] sm:$0xff] %vm514, %v1843
        %2180 = vst.msk [vmem:[%s167 + $0x68] sm:$0xff] %vm514, %v1848
        %2181 = vst.msk [vmem:[%s167 + $0x70] sm:$0xff] %vm514, %v1853
        %2182 = vst.msk [vmem:[%s167 + $0x78] sm:$0xff] %vm514, %v1858
        %2183 = vst.msk [vmem:[%s167 + $0x80] sm:$0xff] %vm514, %v1976
        %2184 = vst.msk [vmem:[%s167 + $0x88] sm:$0xff] %vm514, %v1981
        %2185 = vst.msk [vmem:[%s167 + $0x90] sm:$0xff] %vm514, %v1986
        %2186 = vst.msk [vmem:[%s167 + $0x98] sm:$0xff] %vm514, %v1991
        %2187 = vst.msk [vmem:[%s167 + $0xa0] sm:$0xff] %vm514, %v1996
        %2188 = vst.msk [vmem:[%s167 + $0xa8] sm:$0xff] %vm514, %v2001
        %2189 = vst.msk [vmem:[%s167 + $0xb0] sm:$0xff] %vm514, %v2006
        %2190 = vst.msk [vmem:[%s167 + $0xb8] sm:$0xff] %vm514, %v2011
        %2191 = vst.msk [vmem:[%s167 + $0xc0] sm:$0xff] %vm514, %v2129
        %2192 = vst.msk [vmem:[%s167 + $0xc8] sm:$0xff] %vm514, %v2134
        %2193 = vst.msk [vmem:[%s167 + $0xd0] sm:$0xff] %vm514, %v2139
        %2194 = vst.msk [vmem:[%s167 + $0xd8] sm:$0xff] %vm514, %v2144
        %2195 = vst.msk [vmem:[%s167 + $0xe0] sm:$0xff] %vm514, %v2149
        %2196 = vst.msk [vmem:[%s167 + $0xe8] sm:$0xff] %vm514, %v2154
        %2197 = vst.msk [vmem:[%s167 + $0xf0] sm:$0xff] %vm514, %v2159
        %2198 = vst.msk [vmem:[%s167 + $0xf8] sm:$0xff] %vm514, %v2164
        %s2199 = smul.u32 4, %s16
        %p2200 = scmp.lt.s32.totalorder %s2199, 7
        %s2201 = scalar_select %p2200, %s2199, 7
        %s2202 = smul.addr %s2201, 8
        %s2203 = smul.addr %s2202, 8
        %s2204 = scalar_lea.vmem %s2, %s2203
        // Predicated region
        $region33: #{tpu_custom_call.1} parent=27 // pred_check
          %p2205 = pneg %p81
        $region34: #{tpu_custom_call.1} parent=27 // pred_check_branch
          %2207 = sbr.rel (%p2205) target = $region36
        $region35: #{tpu_custom_call.1} parent=27 // pred_region
          %s2208 = smul.u32 4, %s16
        $region36: #{tpu_custom_call.1} parent=27 // pred_fallthru
          _
      $region28: #{tpu_custom_call.1} parent=5 // pred_fallthru
        _
      %p2209 = scmp.le.s32.totalorder 2, %s11
      // Predicated region
      $region37: #{tpu_custom_call.1} parent=5 // pred_check
        %p2210 = pneg %p2209
      $region38: #{tpu_custom_call.1} parent=5 // pred_check_branch
        %2212 = sbr.rel (%p2210) target = $region40
      $region39: #{tpu_custom_call.1} parent=5 // pred_region
        %s2213 = ssub.s32 %s11, 2
        // Predicated region
        $region41: #{tpu_custom_call.1} parent=39 // pred_check
          %p2214 = pneg %p87
        $region42: #{tpu_custom_call.1} parent=39 // pred_check_branch
          %2216 = sbr.rel (%p2214) target = $region44
        $region43: #{tpu_custom_call.1} parent=39 // pred_region
          %s2217 = smul.u32 4, %s17
          %p2218 = scmp.lt.s32.totalorder %s2217, 7
          %s2219 = scalar_select %p2218, %s2217, 7
          %s2220 = smul.addr %s2219, 8
          %s2221 = smul.addr %s2220, 8
          %s2222 = scalar_lea.vmem %s2, %s2221
        $region44: #{tpu_custom_call.1} parent=39 // pred_fallthru
          _
      $region40: #{tpu_custom_call.1} parent=5 // pred_fallthru
        _
    $region6: #{tpu_custom_call.1} parent=1 // loop_footer
      %s15 = sadd.s32 1, %s11
    $region7: #{tpu_custom_call.1} parent=1 // loop_footer_branch
      %10 = sbr.rel target = $region3
    $region8: #{tpu_custom_call.1} parent=1 // loop_exit
      _
    %2223 = vsyncpa [#allocation3], 1
    %s2224 = scalar_lea.sflag [#allocation3], 1
    %2225 = vsyncpa %s2224, 1

</llo_original>
